<compile_context>
chip_gen: v7x
topology: tpu7x:2x2x1
jax: 0.10.0
libtpu: 0.0.40
codegen_flags: <defaults>
</compile_context>

<pallas_src>
import functools

import jax
import jax.numpy as jnp
from jax.experimental import pallas as pl
from jax.experimental.pallas import tpu as pltpu

K = 7          # conv kernel size
PAD = (K - 1) // 2


def _spatial_gate_kernel(wmax_ref, wmean_ref, bias_ref, x_ref, o_ref, *,
                         C, W, HW, TN):
    # wmax_ref / wmean_ref: VMEM f32[K*K, TN, HW]  (BN-folded weight * border mask)
    # bias_ref:             SMEM f32[1]            (folded BN shift)
    # x_ref / o_ref:        VMEM [TN, C, HW]       (lane-dense: HW is the lane dim)
    x = x_ref[...].astype(jnp.float32)                     # (TN, C, HW)

    # --- ChannelPool: max / mean over channels (sublane reduce, lane-dense) ---
    mx = jnp.max(x, axis=1)                                # (TN, HW)
    mn = jnp.sum(x, axis=1) * jnp.float32(1.0 / C)         # (TN, HW)

    # --- 7x7 conv as 49 taps in the flattened (row-major) frame -------------
    # Tap (dy, dx) needs the pooled map at flat offset s = (dy-PAD)*W + (dx-PAD);
    # realized as a lane roll by (-s) mod HW.  Out-of-image / row-wrap pixels
    # are zeroed by the precomputed weight*mask rows, so roll wrap-around never
    # leaks into the result.
    acc = jnp.zeros((TN, HW), jnp.float32)
    for dy in range(K):
        for dx in range(K):
            t = dy * K + dx
            s = (dy - PAD) * W + (dx - PAD)
            sh = (-s) % HW
            mx_s = pltpu.roll(mx, sh, axis=1) if sh else mx
            mn_s = pltpu.roll(mn, sh, axis=1) if sh else mn
            acc = acc + wmax_ref[t] * mx_s + wmean_ref[t] * mn_s

    # --- sigmoid gate, broadcast-multiply over channels ----------------------
    gate = jax.nn.sigmoid(acc + bias_ref[0])               # (TN, HW)
    o_ref[...] = (x_ref[...].astype(jnp.float32)
                  * gate[:, None, :]).astype(o_ref.dtype)


def _pick_block_n(n):
    for cand in (8, 4, 2, 1):
        if n % cand == 0:
            return cand
    return 1


def spatial_gate(x, conv_w, bn_gamma, bn_beta, bn_mean, bn_var, eps=1e-5):
    """x: f32[N, C, H, W]; conv_w: f32[1, 2, 7, 7]; BN params: f32[1]."""
    N, C, H, W = x.shape
    HW = H * W
    TN = _pick_block_n(N)

    # Fold inference-mode BatchNorm into the (bias-free) conv:
    #   bn(conv(p)) = conv(p) * s + t,  s = gamma/sqrt(var+eps),  t = beta - mean*s
    s = bn_gamma / jnp.sqrt(bn_var + eps)                       # (1,)
    t = bn_beta - bn_mean * s                                   # (1,)
    w_folded = (conv_w[0] * s[0]).astype(jnp.float32)           # (2, K, K)

    # Per-tap valid-pixel (border) masks in the flattened frame, folded with
    # the weights and pre-broadcast over the TN batch rows so the kernel does
    # no scalar broadcasts and no padded scratch buffer.
    dy = jnp.arange(K)
    dx = jnp.arange(K)
    hh = jnp.arange(H)
    ww = jnp.arange(W)
    row_ok = ((hh[None, :] + dy[:, None] - PAD >= 0)
              & (hh[None, :] + dy[:, None] - PAD < H))          # (K, H)
    col_ok = ((ww[None, :] + dx[:, None] - PAD >= 0)
              & (ww[None, :] + dx[:, None] - PAD < W))          # (K, W)
    mask = (row_ok[:, None, :, None] & col_ok[None, :, None, :])
    mask = mask.astype(jnp.float32).reshape(K * K, HW)          # (49, HW)
    wmax = w_folded[0].reshape(K * K, 1) * mask                 # (49, HW)
    wmean = w_folded[1].reshape(K * K, 1) * mask                # (49, HW)
    wmax = jnp.broadcast_to(wmax[:, None, :], (K * K, TN, HW))
    wmean = jnp.broadcast_to(wmean[:, None, :], (K * K, TN, HW))
    bias = t.astype(jnp.float32).reshape(1)

    x2 = x.reshape(N, C, HW)                                    # lane-dense layout (free)

    kernel = functools.partial(_spatial_gate_kernel, C=C, W=W, HW=HW, TN=TN)

    out = pl.pallas_call(
        kernel,
        out_shape=jax.ShapeDtypeStruct((N, C, HW), x.dtype),
        grid=(N // TN,),
        in_specs=[
            pl.BlockSpec((K * K, TN, HW), lambda i: (0, 0, 0)),   # wmax (resident)
            pl.BlockSpec((K * K, TN, HW), lambda i: (0, 0, 0)),   # wmean (resident)
            pl.BlockSpec(memory_space=pltpu.MemorySpace.SMEM),    # folded BN bias
            pl.BlockSpec((TN, C, HW), lambda i: (i, 0, 0)),       # x
        ],
        out_specs=pl.BlockSpec((TN, C, HW), lambda i: (i, 0, 0)),
        compiler_params=pltpu.CompilerParams(
            dimension_semantics=("parallel",),
            vmem_limit_bytes=32 * 1024 * 1024,
        ),
    )(wmax, wmean, bias, x2)
    return out.reshape(N, C, H, W)


def spatial_gate_ref(x, conv_w, bn_gamma, bn_beta, bn_mean, bn_var, eps=1e-5):
    """Pure-JAX reference (same math, via lax.conv) for a sanity check."""
    pooled = jnp.stack([jnp.max(x, axis=1), jnp.mean(x, axis=1)], axis=1)  # (N,2,H,W)
    y = jax.lax.conv_general_dilated(
        pooled, conv_w, window_strides=(1, 1), padding=((PAD, PAD), (PAD, PAD)),
        dimension_numbers=("NCHW", "OIHW", "NCHW"),
        precision=jax.lax.Precision.HIGHEST)
    y = (y - bn_mean[None, :, None, None]) / jnp.sqrt(bn_var + eps)[None, :, None, None]
    y = y * bn_gamma[None, :, None, None] + bn_beta[None, :, None, None]
    return x * jax.nn.sigmoid(y)


if __name__ == "__main__":
    key = jax.random.PRNGKey(0)
    kx, kw = jax.random.split(key)

    N, C, H, W = 2, 4, 16, 16
    x = jax.random.normal(kx, (N, C, H, W), dtype=jnp.float32)

    # Conv2d(2, 1, 7, bias=False) weights — deterministic synthetic init.
    fan_in = 2 * K * K
    bound = 1.0 / (fan_in ** 0.5)
    conv_w = jax.random.uniform(kw, (1, 2, K, K), jnp.float32, -bound, bound)

    # BatchNorm2d(1) parameters (non-trivial, to exercise the BN fold).
    bn_gamma = jnp.full((1,), 0.8, jnp.float32)
    bn_beta = jnp.full((1,), 0.1, jnp.float32)
    bn_mean = jnp.full((1,), 0.05, jnp.float32)
    bn_var = jnp.full((1,), 1.2, jnp.float32)

    out = spatial_gate(x, conv_w, bn_gamma, bn_beta, bn_mean, bn_var)
    out = jax.block_until_ready(out)

    ref = spatial_gate_ref(x, conv_w, bn_gamma, bn_beta, bn_mean, bn_var)
    assert out.shape == (N, C, H, W)
    assert jnp.allclose(out, ref, atol=1e-5, rtol=1e-5), "mismatch vs reference"

    print("KERNEL_OK")
</pallas_src>

<mosaic_0001>
module attributes {stable_mosaic.version = 11 : i64} {
  func.func @_spatial_gate_kernel(%arg0: i32, %arg1: memref<49x2x256xf32, #tpu.memory_space<vmem>>, %arg2: memref<49x2x256xf32, #tpu.memory_space<vmem>>, %arg3: memref<1xf32, #tpu.memory_space<smem>>, %arg4: memref<2x4x256xf32, #tpu.memory_space<vmem>>, %arg5: memref<2x4x256xf32, #tpu.memory_space<vmem>>) attributes {dimension_semantics = [#tpu.dimension_semantics<parallel>], iteration_bounds = array<i64: 1>, scalar_prefetch = 0 : i64, scratch_operands = 0 : i64, tpu.core_type = #tpu.core_type<tc>, window_params = [{pipeline_mode = #tpu.pipeline_mode<synchronous>, transform_indices = @transform_0, window_bounds = array<i64: 49, 2, 256>}, {pipeline_mode = #tpu.pipeline_mode<synchronous>, transform_indices = @transform_1, window_bounds = array<i64: 49, 2, 256>}, {transform_indices = @transform_2, window_bounds = array<i64: 1>}, {transform_indices = @transform_3, window_bounds = array<i64: 2, 4, 256>}, {transform_indices = @transform_4, window_bounds = array<i64: 2, 4, 256>}]} {
    %c0 = arith.constant 0 : index
    %c0_0 = arith.constant 0 : index
    %c0_1 = arith.constant 0 : index
    %0 = vector.load %arg4[%c0, %c0_0, %c0_1] : memref<2x4x256xf32, #tpu.memory_space<vmem>>, vector<2x4x256xf32>
    %cst = arith.constant dense<0xFF800000> : vector<2x256xf32>
    %1 = vector.multi_reduction <maximumf>, %0, %cst [1] : vector<2x4x256xf32> to vector<2x256xf32>
    %cst_2 = arith.constant dense<0.000000e+00> : vector<2x256xf32>
    %2 = vector.multi_reduction <add>, %0, %cst_2 [1] : vector<2x4x256xf32> to vector<2x256xf32>
    %cst_3 = arith.constant 2.500000e-01 : f32
    %3 = vector.broadcast %cst_3 : f32 to vector<2x256xf32>
    %4 = arith.mulf %2, %3 : vector<2x256xf32>
    %cst_4 = arith.constant 0.000000e+00 : f32
    %5 = vector.broadcast %cst_4 : f32 to vector<2x256xf32>
    %c51_i32 = arith.constant 51 : i32
    %6 = tpu.dynamic_rotate %1 by %c51_i32 dim 1 : vector<2x256xf32>, i32 -> vector<2x256xf32>
    %c51_i32_5 = arith.constant 51 : i32
    %7 = tpu.dynamic_rotate %4 by %c51_i32_5 dim 1 : vector<2x256xf32>, i32 -> vector<2x256xf32>
    %c0_6 = arith.constant 0 : index
    %c0_7 = arith.constant 0 : index
    %c0_8 = arith.constant 0 : index
    %8 = vector.load %arg1[%c0_6, %c0_7, %c0_8] : memref<49x2x256xf32, #tpu.memory_space<vmem>>, vector<1x2x256xf32>
    %9 = vector.shape_cast %8 : vector<1x2x256xf32> to vector<2x256xf32>
    %10 = arith.mulf %9, %6 : vector<2x256xf32>
    %11 = arith.addf %5, %10 : vector<2x256xf32>
    %c0_9 = arith.constant 0 : index
    %c0_10 = arith.constant 0 : index
    %c0_11 = arith.constant 0 : index
    %12 = vector.load %arg2[%c0_9, %c0_10, %c0_11] : memref<49x2x256xf32, #tpu.memory_space<vmem>>, vector<1x2x256xf32>
    %13 = vector.shape_cast %12 : vector<1x2x256xf32> to vector<2x256xf32>
    %14 = arith.mulf %13, %7 : vector<2x256xf32>
    %15 = arith.addf %11, %14 : vector<2x256xf32>
    %c50_i32 = arith.constant 50 : i32
    %16 = tpu.dynamic_rotate %1 by %c50_i32 dim 1 : vector<2x256xf32>, i32 -> vector<2x256xf32>
    %c50_i32_12 = arith.constant 50 : i32
    %17 = tpu.dynamic_rotate %4 by %c50_i32_12 dim 1 : vector<2x256xf32>, i32 -> vector<2x256xf32>
    %c1 = arith.constant 1 : index
    %c0_13 = arith.constant 0 : index
    %c0_14 = arith.constant 0 : index
    %18 = vector.load %arg1[%c1, %c0_13, %c0_14] : memref<49x2x256xf32, #tpu.memory_space<vmem>>, vector<1x2x256xf32>
    %19 = vector.shape_cast %18 : vector<1x2x256xf32> to vector<2x256xf32>
    %20 = arith.mulf %19, %16 : vector<2x256xf32>
    %21 = arith.addf %15, %20 : vector<2x256xf32>
    %c1_15 = arith.constant 1 : index
    %c0_16 = arith.constant 0 : index
    %c0_17 = arith.constant 0 : index
    %22 = vector.load %arg2[%c1_15, %c0_16, %c0_17] : memref<49x2x256xf32, #tpu.memory_space<vmem>>, vector<1x2x256xf32>
    %23 = vector.shape_cast %22 : vector<1x2x256xf32> to vector<2x256xf32>
    %24 = arith.mulf %23, %17 : vector<2x256xf32>
    %25 = arith.addf %21, %24 : vector<2x256xf32>
    %c49_i32 = arith.constant 49 : i32
    %26 = tpu.dynamic_rotate %1 by %c49_i32 dim 1 : vector<2x256xf32>, i32 -> vector<2x256xf32>
    %c49_i32_18 = arith.constant 49 : i32
    %27 = tpu.dynamic_rotate %4 by %c49_i32_18 dim 1 : vector<2x256xf32>, i32 -> vector<2x256xf32>
    %c2 = arith.constant 2 : index
    %c0_19 = arith.constant 0 : index
    %c0_20 = arith.constant 0 : index
    %28 = vector.load %arg1[%c2, %c0_19, %c0_20] : memref<49x2x256xf32, #tpu.memory_space<vmem>>, vector<1x2x256xf32>
    %29 = vector.shape_cast %28 : vector<1x2x256xf32> to vector<2x256xf32>
    %30 = arith.mulf %29, %26 : vector<2x256xf32>
    %31 = arith.addf %25, %30 : vector<2x256xf32>
    %c2_21 = arith.constant 2 : index
    %c0_22 = arith.constant 0 : index
    %c0_23 = arith.constant 0 : index
    %32 = vector.load %arg2[%c2_21, %c0_22, %c0_23] : memref<49x2x256xf32, #tpu.memory_space<vmem>>, vector<1x2x256xf32>
    %33 = vector.shape_cast %32 : vector<1x2x256xf32> to vector<2x256xf32>
    %34 = arith.mulf %33, %27 : vector<2x256xf32>
    %35 = arith.addf %31, %34 : vector<2x256xf32>
    %c48_i32 = arith.constant 48 : i32
    %36 = tpu.dynamic_rotate %1 by %c48_i32 dim 1 : vector<2x256xf32>, i32 -> vector<2x256xf32>
    %c48_i32_24 = arith.constant 48 : i32
    %37 = tpu.dynamic_rotate %4 by %c48_i32_24 dim 1 : vector<2x256xf32>, i32 -> vector<2x256xf32>
    %c3 = arith.constant 3 : index
    %c0_25 = arith.constant 0 : index
    %c0_26 = arith.constant 0 : index
    %38 = vector.load %arg1[%c3, %c0_25, %c0_26] : memref<49x2x256xf32, #tpu.memory_space<vmem>>, vector<1x2x256xf32>
    %39 = vector.shape_cast %38 : vector<1x2x256xf32> to vector<2x256xf32>
    %40 = arith.mulf %39, %36 : vector<2x256xf32>
    %41 = arith.addf %35, %40 : vector<2x256xf32>
    %c3_27 = arith.constant 3 : index
    %c0_28 = arith.constant 0 : index
    %c0_29 = arith.constant 0 : index
    %42 = vector.load %arg2[%c3_27, %c0_28, %c0_29] : memref<49x2x256xf32, #tpu.memory_space<vmem>>, vector<1x2x256xf32>
    %43 = vector.shape_cast %42 : vector<1x2x256xf32> to vector<2x256xf32>
    %44 = arith.mulf %43, %37 : vector<2x256xf32>
    %45 = arith.addf %41, %44 : vector<2x256xf32>
    %c47_i32 = arith.constant 47 : i32
    %46 = tpu.dynamic_rotate %1 by %c47_i32 dim 1 : vector<2x256xf32>, i32 -> vector<2x256xf32>
    %c47_i32_30 = arith.constant 47 : i32
    %47 = tpu.dynamic_rotate %4 by %c47_i32_30 dim 1 : vector<2x256xf32>, i32 -> vector<2x256xf32>
    %c4 = arith.constant 4 : index
    %c0_31 = arith.constant 0 : index
    %c0_32 = arith.constant 0 : index
    %48 = vector.load %arg1[%c4, %c0_31, %c0_32] : memref<49x2x256xf32, #tpu.memory_space<vmem>>, vector<1x2x256xf32>
    %49 = vector.shape_cast %48 : vector<1x2x256xf32> to vector<2x256xf32>
    %50 = arith.mulf %49, %46 : vector<2x256xf32>
    %51 = arith.addf %45, %50 : vector<2x256xf32>
    %c4_33 = arith.constant 4 : index
    %c0_34 = arith.constant 0 : index
    %c0_35 = arith.constant 0 : index
    %52 = vector.load %arg2[%c4_33, %c0_34, %c0_35] : memref<49x2x256xf32, #tpu.memory_space<vmem>>, vector<1x2x256xf32>
    %53 = vector.shape_cast %52 : vector<1x2x256xf32> to vector<2x256xf32>
    %54 = arith.mulf %53, %47 : vector<2x256xf32>
    %55 = arith.addf %51, %54 : vector<2x256xf32>
    %c46_i32 = arith.constant 46 : i32
    %56 = tpu.dynamic_rotate %1 by %c46_i32 dim 1 : vector<2x256xf32>, i32 -> vector<2x256xf32>
    %c46_i32_36 = arith.constant 46 : i32
    %57 = tpu.dynamic_rotate %4 by %c46_i32_36 dim 1 : vector<2x256xf32>, i32 -> vector<2x256xf32>
    %c5 = arith.constant 5 : index
    %c0_37 = arith.constant 0 : index
    %c0_38 = arith.constant 0 : index
    %58 = vector.load %arg1[%c5, %c0_37, %c0_38] : memref<49x2x256xf32, #tpu.memory_space<vmem>>, vector<1x2x256xf32>
    %59 = vector.shape_cast %58 : vector<1x2x256xf32> to vector<2x256xf32>
    %60 = arith.mulf %59, %56 : vector<2x256xf32>
    %61 = arith.addf %55, %60 : vector<2x256xf32>
    %c5_39 = arith.constant 5 : index
    %c0_40 = arith.constant 0 : index
    %c0_41 = arith.constant 0 : index
    %62 = vector.load %arg2[%c5_39, %c0_40, %c0_41] : memref<49x2x256xf32, #tpu.memory_space<vmem>>, vector<1x2x256xf32>
    %63 = vector.shape_cast %62 : vector<1x2x256xf32> to vector<2x256xf32>
    %64 = arith.mulf %63, %57 : vector<2x256xf32>
    %65 = arith.addf %61, %64 : vector<2x256xf32>
    %c45_i32 = arith.constant 45 : i32
    %66 = tpu.dynamic_rotate %1 by %c45_i32 dim 1 : vector<2x256xf32>, i32 -> vector<2x256xf32>
    %c45_i32_42 = arith.constant 45 : i32
    %67 = tpu.dynamic_rotate %4 by %c45_i32_42 dim 1 : vector<2x256xf32>, i32 -> vector<2x256xf32>
    %c6 = arith.constant 6 : index
    %c0_43 = arith.constant 0 : index
    %c0_44 = arith.constant 0 : index
    %68 = vector.load %arg1[%c6, %c0_43, %c0_44] : memref<49x2x256xf32, #tpu.memory_space<vmem>>, vector<1x2x256xf32>
    %69 = vector.shape_cast %68 : vector<1x2x256xf32> to vector<2x256xf32>
    %70 = arith.mulf %69, %66 : vector<2x256xf32>
    %71 = arith.addf %65, %70 : vector<2x256xf32>
    %c6_45 = arith.constant 6 : index
    %c0_46 = arith.constant 0 : index
    %c0_47 = arith.constant 0 : index
    %72 = vector.load %arg2[%c6_45, %c0_46, %c0_47] : memref<49x2x256xf32, #tpu.memory_space<vmem>>, vector<1x2x256xf32>
    %73 = vector.shape_cast %72 : vector<1x2x256xf32> to vector<2x256xf32>
    %74 = arith.mulf %73, %67 : vector<2x256xf32>
    %75 = arith.addf %71, %74 : vector<2x256xf32>
    %c35_i32 = arith.constant 35 : i32
    %76 = tpu.dynamic_rotate %1 by %c35_i32 dim 1 : vector<2x256xf32>, i32 -> vector<2x256xf32>
    %c35_i32_48 = arith.constant 35 : i32
    %77 = tpu.dynamic_rotate %4 by %c35_i32_48 dim 1 : vector<2x256xf32>, i32 -> vector<2x256xf32>
    %c7 = arith.constant 7 : index
    %c0_49 = arith.constant 0 : index
    %c0_50 = arith.constant 0 : index
    %78 = vector.load %arg1[%c7, %c0_49, %c0_50] : memref<49x2x256xf32, #tpu.memory_space<vmem>>, vector<1x2x256xf32>
    %79 = vector.shape_cast %78 : vector<1x2x256xf32> to vector<2x256xf32>
    %80 = arith.mulf %79, %76 : vector<2x256xf32>
    %81 = arith.addf %75, %80 : vector<2x256xf32>
    %c7_51 = arith.constant 7 : index
    %c0_52 = arith.constant 0 : index
    %c0_53 = arith.constant 0 : index
    %82 = vector.load %arg2[%c7_51, %c0_52, %c0_53] : memref<49x2x256xf32, #tpu.memory_space<vmem>>, vector<1x2x256xf32>
    %83 = vector.shape_cast %82 : vector<1x2x256xf32> to vector<2x256xf32>
    %84 = arith.mulf %83, %77 : vector<2x256xf32>
    %85 = arith.addf %81, %84 : vector<2x256xf32>
    %c34_i32 = arith.constant 34 : i32
    %86 = tpu.dynamic_rotate %1 by %c34_i32 dim 1 : vector<2x256xf32>, i32 -> vector<2x256xf32>
    %c34_i32_54 = arith.constant 34 : i32
    %87 = tpu.dynamic_rotate %4 by %c34_i32_54 dim 1 : vector<2x256xf32>, i32 -> vector<2x256xf32>
    %c8 = arith.constant 8 : index
    %c0_55 = arith.constant 0 : index
    %c0_56 = arith.constant 0 : index
    %88 = vector.load %arg1[%c8, %c0_55, %c0_56] : memref<49x2x256xf32, #tpu.memory_space<vmem>>, vector<1x2x256xf32>
    %89 = vector.shape_cast %88 : vector<1x2x256xf32> to vector<2x256xf32>
    %90 = arith.mulf %89, %86 : vector<2x256xf32>
    %91 = arith.addf %85, %90 : vector<2x256xf32>
    %c8_57 = arith.constant 8 : index
    %c0_58 = arith.constant 0 : index
    %c0_59 = arith.constant 0 : index
    %92 = vector.load %arg2[%c8_57, %c0_58, %c0_59] : memref<49x2x256xf32, #tpu.memory_space<vmem>>, vector<1x2x256xf32>
    %93 = vector.shape_cast %92 : vector<1x2x256xf32> to vector<2x256xf32>
    %94 = arith.mulf %93, %87 : vector<2x256xf32>
    %95 = arith.addf %91, %94 : vector<2x256xf32>
    %c33_i32 = arith.constant 33 : i32
    %96 = tpu.dynamic_rotate %1 by %c33_i32 dim 1 : vector<2x256xf32>, i32 -> vector<2x256xf32>
    %c33_i32_60 = arith.constant 33 : i32
    %97 = tpu.dynamic_rotate %4 by %c33_i32_60 dim 1 : vector<2x256xf32>, i32 -> vector<2x256xf32>
    %c9 = arith.constant 9 : index
    %c0_61 = arith.constant 0 : index
    %c0_62 = arith.constant 0 : index
    %98 = vector.load %arg1[%c9, %c0_61, %c0_62] : memref<49x2x256xf32, #tpu.memory_space<vmem>>, vector<1x2x256xf32>
    %99 = vector.shape_cast %98 : vector<1x2x256xf32> to vector<2x256xf32>
    %100 = arith.mulf %99, %96 : vector<2x256xf32>
    %101 = arith.addf %95, %100 : vector<2x256xf32>
    %c9_63 = arith.constant 9 : index
    %c0_64 = arith.constant 0 : index
    %c0_65 = arith.constant 0 : index
    %102 = vector.load %arg2[%c9_63, %c0_64, %c0_65] : memref<49x2x256xf32, #tpu.memory_space<vmem>>, vector<1x2x256xf32>
    %103 = vector.shape_cast %102 : vector<1x2x256xf32> to vector<2x256xf32>
    %104 = arith.mulf %103, %97 : vector<2x256xf32>
    %105 = arith.addf %101, %104 : vector<2x256xf32>
    %c32_i32 = arith.constant 32 : i32
    %106 = tpu.dynamic_rotate %1 by %c32_i32 dim 1 : vector<2x256xf32>, i32 -> vector<2x256xf32>
    %c32_i32_66 = arith.constant 32 : i32
    %107 = tpu.dynamic_rotate %4 by %c32_i32_66 dim 1 : vector<2x256xf32>, i32 -> vector<2x256xf32>
    %c10 = arith.constant 10 : index
    %c0_67 = arith.constant 0 : index
    %c0_68 = arith.constant 0 : index
    %108 = vector.load %arg1[%c10, %c0_67, %c0_68] : memref<49x2x256xf32, #tpu.memory_space<vmem>>, vector<1x2x256xf32>
    %109 = vector.shape_cast %108 : vector<1x2x256xf32> to vector<2x256xf32>
    %110 = arith.mulf %109, %106 : vector<2x256xf32>
    %111 = arith.addf %105, %110 : vector<2x256xf32>
    %c10_69 = arith.constant 10 : index
    %c0_70 = arith.constant 0 : index
    %c0_71 = arith.constant 0 : index
    %112 = vector.load %arg2[%c10_69, %c0_70, %c0_71] : memref<49x2x256xf32, #tpu.memory_space<vmem>>, vector<1x2x256xf32>
    %113 = vector.shape_cast %112 : vector<1x2x256xf32> to vector<2x256xf32>
    %114 = arith.mulf %113, %107 : vector<2x256xf32>
    %115 = arith.addf %111, %114 : vector<2x256xf32>
    %c31_i32 = arith.constant 31 : i32
    %116 = tpu.dynamic_rotate %1 by %c31_i32 dim 1 : vector<2x256xf32>, i32 -> vector<2x256xf32>
    %c31_i32_72 = arith.constant 31 : i32
    %117 = tpu.dynamic_rotate %4 by %c31_i32_72 dim 1 : vector<2x256xf32>, i32 -> vector<2x256xf32>
    %c11 = arith.constant 11 : index
    %c0_73 = arith.constant 0 : index
    %c0_74 = arith.constant 0 : index
    %118 = vector.load %arg1[%c11, %c0_73, %c0_74] : memref<49x2x256xf32, #tpu.memory_space<vmem>>, vector<1x2x256xf32>
    %119 = vector.shape_cast %118 : vector<1x2x256xf32> to vector<2x256xf32>
    %120 = arith.mulf %119, %116 : vector<2x256xf32>
    %121 = arith.addf %115, %120 : vector<2x256xf32>
    %c11_75 = arith.constant 11 : index
    %c0_76 = arith.constant 0 : index
    %c0_77 = arith.constant 0 : index
    %122 = vector.load %arg2[%c11_75, %c0_76, %c0_77] : memref<49x2x256xf32, #tpu.memory_space<vmem>>, vector<1x2x256xf32>
    %123 = vector.shape_cast %122 : vector<1x2x256xf32> to vector<2x256xf32>
    %124 = arith.mulf %123, %117 : vector<2x256xf32>
    %125 = arith.addf %121, %124 : vector<2x256xf32>
    %c30_i32 = arith.constant 30 : i32
    %126 = tpu.dynamic_rotate %1 by %c30_i32 dim 1 : vector<2x256xf32>, i32 -> vector<2x256xf32>
    %c30_i32_78 = arith.constant 30 : i32
    %127 = tpu.dynamic_rotate %4 by %c30_i32_78 dim 1 : vector<2x256xf32>, i32 -> vector<2x256xf32>
    %c12 = arith.constant 12 : index
    %c0_79 = arith.constant 0 : index
    %c0_80 = arith.constant 0 : index
    %128 = vector.load %arg1[%c12, %c0_79, %c0_80] : memref<49x2x256xf32, #tpu.memory_space<vmem>>, vector<1x2x256xf32>
    %129 = vector.shape_cast %128 : vector<1x2x256xf32> to vector<2x256xf32>
    %130 = arith.mulf %129, %126 : vector<2x256xf32>
    %131 = arith.addf %125, %130 : vector<2x256xf32>
    %c12_81 = arith.constant 12 : index
    %c0_82 = arith.constant 0 : index
    %c0_83 = arith.constant 0 : index
    %132 = vector.load %arg2[%c12_81, %c0_82, %c0_83] : memref<49x2x256xf32, #tpu.memory_space<vmem>>, vector<1x2x256xf32>
    %133 = vector.shape_cast %132 : vector<1x2x256xf32> to vector<2x256xf32>
    %134 = arith.mulf %133, %127 : vector<2x256xf32>
    %135 = arith.addf %131, %134 : vector<2x256xf32>
    %c29_i32 = arith.constant 29 : i32
    %136 = tpu.dynamic_rotate %1 by %c29_i32 dim 1 : vector<2x256xf32>, i32 -> vector<2x256xf32>
    %c29_i32_84 = arith.constant 29 : i32
    %137 = tpu.dynamic_rotate %4 by %c29_i32_84 dim 1 : vector<2x256xf32>, i32 -> vector<2x256xf32>
    %c13 = arith.constant 13 : index
    %c0_85 = arith.constant 0 : index
    %c0_86 = arith.constant 0 : index
    %138 = vector.load %arg1[%c13, %c0_85, %c0_86] : memref<49x2x256xf32, #tpu.memory_space<vmem>>, vector<1x2x256xf32>
    %139 = vector.shape_cast %138 : vector<1x2x256xf32> to vector<2x256xf32>
    %140 = arith.mulf %139, %136 : vector<2x256xf32>
    %141 = arith.addf %135, %140 : vector<2x256xf32>
    %c13_87 = arith.constant 13 : index
    %c0_88 = arith.constant 0 : index
    %c0_89 = arith.constant 0 : index
    %142 = vector.load %arg2[%c13_87, %c0_88, %c0_89] : memref<49x2x256xf32, #tpu.memory_space<vmem>>, vector<1x2x256xf32>
    %143 = vector.shape_cast %142 : vector<1x2x256xf32> to vector<2x256xf32>
    %144 = arith.mulf %143, %137 : vector<2x256xf32>
    %145 = arith.addf %141, %144 : vector<2x256xf32>
    %c19_i32 = arith.constant 19 : i32
    %146 = tpu.dynamic_rotate %1 by %c19_i32 dim 1 : vector<2x256xf32>, i32 -> vector<2x256xf32>
    %c19_i32_90 = arith.constant 19 : i32
    %147 = tpu.dynamic_rotate %4 by %c19_i32_90 dim 1 : vector<2x256xf32>, i32 -> vector<2x256xf32>
    %c14 = arith.constant 14 : index
    %c0_91 = arith.constant 0 : index
    %c0_92 = arith.constant 0 : index
    %148 = vector.load %arg1[%c14, %c0_91, %c0_92] : memref<49x2x256xf32, #tpu.memory_space<vmem>>, vector<1x2x256xf32>
    %149 = vector.shape_cast %148 : vector<1x2x256xf32> to vector<2x256xf32>
    %150 = arith.mulf %149, %146 : vector<2x256xf32>
    %151 = arith.addf %145, %150 : vector<2x256xf32>
    %c14_93 = arith.constant 14 : index
    %c0_94 = arith.constant 0 : index
    %c0_95 = arith.constant 0 : index
    %152 = vector.load %arg2[%c14_93, %c0_94, %c0_95] : memref<49x2x256xf32, #tpu.memory_space<vmem>>, vector<1x2x256xf32>
    %153 = vector.shape_cast %152 : vector<1x2x256xf32> to vector<2x256xf32>
    %154 = arith.mulf %153, %147 : vector<2x256xf32>
    %155 = arith.addf %151, %154 : vector<2x256xf32>
    %c18_i32 = arith.constant 18 : i32
    %156 = tpu.dynamic_rotate %1 by %c18_i32 dim 1 : vector<2x256xf32>, i32 -> vector<2x256xf32>
    %c18_i32_96 = arith.constant 18 : i32
    %157 = tpu.dynamic_rotate %4 by %c18_i32_96 dim 1 : vector<2x256xf32>, i32 -> vector<2x256xf32>
    %c15 = arith.constant 15 : index
    %c0_97 = arith.constant 0 : index
    %c0_98 = arith.constant 0 : index
    %158 = vector.load %arg1[%c15, %c0_97, %c0_98] : memref<49x2x256xf32, #tpu.memory_space<vmem>>, vector<1x2x256xf32>
    %159 = vector.shape_cast %158 : vector<1x2x256xf32> to vector<2x256xf32>
    %160 = arith.mulf %159, %156 : vector<2x256xf32>
    %161 = arith.addf %155, %160 : vector<2x256xf32>
    %c15_99 = arith.constant 15 : index
    %c0_100 = arith.constant 0 : index
    %c0_101 = arith.constant 0 : index
    %162 = vector.load %arg2[%c15_99, %c0_100, %c0_101] : memref<49x2x256xf32, #tpu.memory_space<vmem>>, vector<1x2x256xf32>
    %163 = vector.shape_cast %162 : vector<1x2x256xf32> to vector<2x256xf32>
    %164 = arith.mulf %163, %157 : vector<2x256xf32>
    %165 = arith.addf %161, %164 : vector<2x256xf32>
    %c17_i32 = arith.constant 17 : i32
    %166 = tpu.dynamic_rotate %1 by %c17_i32 dim 1 : vector<2x256xf32>, i32 -> vector<2x256xf32>
    %c17_i32_102 = arith.constant 17 : i32
    %167 = tpu.dynamic_rotate %4 by %c17_i32_102 dim 1 : vector<2x256xf32>, i32 -> vector<2x256xf32>
    %c16 = arith.constant 16 : index
    %c0_103 = arith.constant 0 : index
    %c0_104 = arith.constant 0 : index
    %168 = vector.load %arg1[%c16, %c0_103, %c0_104] : memref<49x2x256xf32, #tpu.memory_space<vmem>>, vector<1x2x256xf32>
    %169 = vector.shape_cast %168 : vector<1x2x256xf32> to vector<2x256xf32>
    %170 = arith.mulf %169, %166 : vector<2x256xf32>
    %171 = arith.addf %165, %170 : vector<2x256xf32>
    %c16_105 = arith.constant 16 : index
    %c0_106 = arith.constant 0 : index
    %c0_107 = arith.constant 0 : index
    %172 = vector.load %arg2[%c16_105, %c0_106, %c0_107] : memref<49x2x256xf32, #tpu.memory_space<vmem>>, vector<1x2x256xf32>
    %173 = vector.shape_cast %172 : vector<1x2x256xf32> to vector<2x256xf32>
    %174 = arith.mulf %173, %167 : vector<2x256xf32>
    %175 = arith.addf %171, %174 : vector<2x256xf32>
    %c16_i32 = arith.constant 16 : i32
    %176 = tpu.dynamic_rotate %1 by %c16_i32 dim 1 : vector<2x256xf32>, i32 -> vector<2x256xf32>
    %c16_i32_108 = arith.constant 16 : i32
    %177 = tpu.dynamic_rotate %4 by %c16_i32_108 dim 1 : vector<2x256xf32>, i32 -> vector<2x256xf32>
    %c17 = arith.constant 17 : index
    %c0_109 = arith.constant 0 : index
    %c0_110 = arith.constant 0 : index
    %178 = vector.load %arg1[%c17, %c0_109, %c0_110] : memref<49x2x256xf32, #tpu.memory_space<vmem>>, vector<1x2x256xf32>
    %179 = vector.shape_cast %178 : vector<1x2x256xf32> to vector<2x256xf32>
    %180 = arith.mulf %179, %176 : vector<2x256xf32>
    %181 = arith.addf %175, %180 : vector<2x256xf32>
    %c17_111 = arith.constant 17 : index
    %c0_112 = arith.constant 0 : index
    %c0_113 = arith.constant 0 : index
    %182 = vector.load %arg2[%c17_111, %c0_112, %c0_113] : memref<49x2x256xf32, #tpu.memory_space<vmem>>, vector<1x2x256xf32>
    %183 = vector.shape_cast %182 : vector<1x2x256xf32> to vector<2x256xf32>
    %184 = arith.mulf %183, %177 : vector<2x256xf32>
    %185 = arith.addf %181, %184 : vector<2x256xf32>
    %c15_i32 = arith.constant 15 : i32
    %186 = tpu.dynamic_rotate %1 by %c15_i32 dim 1 : vector<2x256xf32>, i32 -> vector<2x256xf32>
    %c15_i32_114 = arith.constant 15 : i32
    %187 = tpu.dynamic_rotate %4 by %c15_i32_114 dim 1 : vector<2x256xf32>, i32 -> vector<2x256xf32>
    %c18 = arith.constant 18 : index
    %c0_115 = arith.constant 0 : index
    %c0_116 = arith.constant 0 : index
    %188 = vector.load %arg1[%c18, %c0_115, %c0_116] : memref<49x2x256xf32, #tpu.memory_space<vmem>>, vector<1x2x256xf32>
    %189 = vector.shape_cast %188 : vector<1x2x256xf32> to vector<2x256xf32>
    %190 = arith.mulf %189, %186 : vector<2x256xf32>
    %191 = arith.addf %185, %190 : vector<2x256xf32>
    %c18_117 = arith.constant 18 : index
    %c0_118 = arith.constant 0 : index
    %c0_119 = arith.constant 0 : index
    %192 = vector.load %arg2[%c18_117, %c0_118, %c0_119] : memref<49x2x256xf32, #tpu.memory_space<vmem>>, vector<1x2x256xf32>
    %193 = vector.shape_cast %192 : vector<1x2x256xf32> to vector<2x256xf32>
    %194 = arith.mulf %193, %187 : vector<2x256xf32>
    %195 = arith.addf %191, %194 : vector<2x256xf32>
    %c14_i32 = arith.constant 14 : i32
    %196 = tpu.dynamic_rotate %1 by %c14_i32 dim 1 : vector<2x256xf32>, i32 -> vector<2x256xf32>
    %c14_i32_120 = arith.constant 14 : i32
    %197 = tpu.dynamic_rotate %4 by %c14_i32_120 dim 1 : vector<2x256xf32>, i32 -> vector<2x256xf32>
    %c19 = arith.constant 19 : index
    %c0_121 = arith.constant 0 : index
    %c0_122 = arith.constant 0 : index
    %198 = vector.load %arg1[%c19, %c0_121, %c0_122] : memref<49x2x256xf32, #tpu.memory_space<vmem>>, vector<1x2x256xf32>
    %199 = vector.shape_cast %198 : vector<1x2x256xf32> to vector<2x256xf32>
    %200 = arith.mulf %199, %196 : vector<2x256xf32>
    %201 = arith.addf %195, %200 : vector<2x256xf32>
    %c19_123 = arith.constant 19 : index
    %c0_124 = arith.constant 0 : index
    %c0_125 = arith.constant 0 : index
    %202 = vector.load %arg2[%c19_123, %c0_124, %c0_125] : memref<49x2x256xf32, #tpu.memory_space<vmem>>, vector<1x2x256xf32>
    %203 = vector.shape_cast %202 : vector<1x2x256xf32> to vector<2x256xf32>
    %204 = arith.mulf %203, %197 : vector<2x256xf32>
    %205 = arith.addf %201, %204 : vector<2x256xf32>
    %c13_i32 = arith.constant 13 : i32
    %206 = tpu.dynamic_rotate %1 by %c13_i32 dim 1 : vector<2x256xf32>, i32 -> vector<2x256xf32>
    %c13_i32_126 = arith.constant 13 : i32
    %207 = tpu.dynamic_rotate %4 by %c13_i32_126 dim 1 : vector<2x256xf32>, i32 -> vector<2x256xf32>
    %c20 = arith.constant 20 : index
    %c0_127 = arith.constant 0 : index
    %c0_128 = arith.constant 0 : index
    %208 = vector.load %arg1[%c20, %c0_127, %c0_128] : memref<49x2x256xf32, #tpu.memory_space<vmem>>, vector<1x2x256xf32>
    %209 = vector.shape_cast %208 : vector<1x2x256xf32> to vector<2x256xf32>
    %210 = arith.mulf %209, %206 : vector<2x256xf32>
    %211 = arith.addf %205, %210 : vector<2x256xf32>
    %c20_129 = arith.constant 20 : index
    %c0_130 = arith.constant 0 : index
    %c0_131 = arith.constant 0 : index
    %212 = vector.load %arg2[%c20_129, %c0_130, %c0_131] : memref<49x2x256xf32, #tpu.memory_space<vmem>>, vector<1x2x256xf32>
    %213 = vector.shape_cast %212 : vector<1x2x256xf32> to vector<2x256xf32>
    %214 = arith.mulf %213, %207 : vector<2x256xf32>
    %215 = arith.addf %211, %214 : vector<2x256xf32>
    %c3_i32 = arith.constant 3 : i32
    %216 = tpu.dynamic_rotate %1 by %c3_i32 dim 1 : vector<2x256xf32>, i32 -> vector<2x256xf32>
    %c3_i32_132 = arith.constant 3 : i32
    %217 = tpu.dynamic_rotate %4 by %c3_i32_132 dim 1 : vector<2x256xf32>, i32 -> vector<2x256xf32>
    %c21 = arith.constant 21 : index
    %c0_133 = arith.constant 0 : index
    %c0_134 = arith.constant 0 : index
    %218 = vector.load %arg1[%c21, %c0_133, %c0_134] : memref<49x2x256xf32, #tpu.memory_space<vmem>>, vector<1x2x256xf32>
    %219 = vector.shape_cast %218 : vector<1x2x256xf32> to vector<2x256xf32>
    %220 = arith.mulf %219, %216 : vector<2x256xf32>
    %221 = arith.addf %215, %220 : vector<2x256xf32>
    %c21_135 = arith.constant 21 : index
    %c0_136 = arith.constant 0 : index
    %c0_137 = arith.constant 0 : index
    %222 = vector.load %arg2[%c21_135, %c0_136, %c0_137] : memref<49x2x256xf32, #tpu.memory_space<vmem>>, vector<1x2x256xf32>
    %223 = vector.shape_cast %222 : vector<1x2x256xf32> to vector<2x256xf32>
    %224 = arith.mulf %223, %217 : vector<2x256xf32>
    %225 = arith.addf %221, %224 : vector<2x256xf32>
    %c2_i32 = arith.constant 2 : i32
    %226 = tpu.dynamic_rotate %1 by %c2_i32 dim 1 : vector<2x256xf32>, i32 -> vector<2x256xf32>
    %c2_i32_138 = arith.constant 2 : i32
    %227 = tpu.dynamic_rotate %4 by %c2_i32_138 dim 1 : vector<2x256xf32>, i32 -> vector<2x256xf32>
    %c22 = arith.constant 22 : index
    %c0_139 = arith.constant 0 : index
    %c0_140 = arith.constant 0 : index
    %228 = vector.load %arg1[%c22, %c0_139, %c0_140] : memref<49x2x256xf32, #tpu.memory_space<vmem>>, vector<1x2x256xf32>
    %229 = vector.shape_cast %228 : vector<1x2x256xf32> to vector<2x256xf32>
    %230 = arith.mulf %229, %226 : vector<2x256xf32>
    %231 = arith.addf %225, %230 : vector<2x256xf32>
    %c22_141 = arith.constant 22 : index
    %c0_142 = arith.constant 0 : index
    %c0_143 = arith.constant 0 : index
    %232 = vector.load %arg2[%c22_141, %c0_142, %c0_143] : memref<49x2x256xf32, #tpu.memory_space<vmem>>, vector<1x2x256xf32>
    %233 = vector.shape_cast %232 : vector<1x2x256xf32> to vector<2x256xf32>
    %234 = arith.mulf %233, %227 : vector<2x256xf32>
    %235 = arith.addf %231, %234 : vector<2x256xf32>
    %c1_i32 = arith.constant 1 : i32
    %236 = tpu.dynamic_rotate %1 by %c1_i32 dim 1 : vector<2x256xf32>, i32 -> vector<2x256xf32>
    %c1_i32_144 = arith.constant 1 : i32
    %237 = tpu.dynamic_rotate %4 by %c1_i32_144 dim 1 : vector<2x256xf32>, i32 -> vector<2x256xf32>
    %c23 = arith.constant 23 : index
    %c0_145 = arith.constant 0 : index
    %c0_146 = arith.constant 0 : index
    %238 = vector.load %arg1[%c23, %c0_145, %c0_146] : memref<49x2x256xf32, #tpu.memory_space<vmem>>, vector<1x2x256xf32>
    %239 = vector.shape_cast %238 : vector<1x2x256xf32> to vector<2x256xf32>
    %240 = arith.mulf %239, %236 : vector<2x256xf32>
    %241 = arith.addf %235, %240 : vector<2x256xf32>
    %c23_147 = arith.constant 23 : index
    %c0_148 = arith.constant 0 : index
    %c0_149 = arith.constant 0 : index
    %242 = vector.load %arg2[%c23_147, %c0_148, %c0_149] : memref<49x2x256xf32, #tpu.memory_space<vmem>>, vector<1x2x256xf32>
    %243 = vector.shape_cast %242 : vector<1x2x256xf32> to vector<2x256xf32>
    %244 = arith.mulf %243, %237 : vector<2x256xf32>
    %245 = arith.addf %241, %244 : vector<2x256xf32>
    %c24 = arith.constant 24 : index
    %c0_150 = arith.constant 0 : index
    %c0_151 = arith.constant 0 : index
    %246 = vector.load %arg1[%c24, %c0_150, %c0_151] : memref<49x2x256xf32, #tpu.memory_space<vmem>>, vector<1x2x256xf32>
    %247 = vector.shape_cast %246 : vector<1x2x256xf32> to vector<2x256xf32>
    %248 = arith.mulf %247, %1 : vector<2x256xf32>
    %249 = arith.addf %245, %248 : vector<2x256xf32>
    %c24_152 = arith.constant 24 : index
    %c0_153 = arith.constant 0 : index
    %c0_154 = arith.constant 0 : index
    %250 = vector.load %arg2[%c24_152, %c0_153, %c0_154] : memref<49x2x256xf32, #tpu.memory_space<vmem>>, vector<1x2x256xf32>
    %251 = vector.shape_cast %250 : vector<1x2x256xf32> to vector<2x256xf32>
    %252 = arith.mulf %251, %4 : vector<2x256xf32>
    %253 = arith.addf %249, %252 : vector<2x256xf32>
    %c255_i32 = arith.constant 255 : i32
    %254 = tpu.dynamic_rotate %1 by %c255_i32 dim 1 : vector<2x256xf32>, i32 -> vector<2x256xf32>
    %c255_i32_155 = arith.constant 255 : i32
    %255 = tpu.dynamic_rotate %4 by %c255_i32_155 dim 1 : vector<2x256xf32>, i32 -> vector<2x256xf32>
    %c25 = arith.constant 25 : index
    %c0_156 = arith.constant 0 : index
    %c0_157 = arith.constant 0 : index
    %256 = vector.load %arg1[%c25, %c0_156, %c0_157] : memref<49x2x256xf32, #tpu.memory_space<vmem>>, vector<1x2x256xf32>
    %257 = vector.shape_cast %256 : vector<1x2x256xf32> to vector<2x256xf32>
    %258 = arith.mulf %257, %254 : vector<2x256xf32>
    %259 = arith.addf %253, %258 : vector<2x256xf32>
    %c25_158 = arith.constant 25 : index
    %c0_159 = arith.constant 0 : index
    %c0_160 = arith.constant 0 : index
    %260 = vector.load %arg2[%c25_158, %c0_159, %c0_160] : memref<49x2x256xf32, #tpu.memory_space<vmem>>, vector<1x2x256xf32>
    %261 = vector.shape_cast %260 : vector<1x2x256xf32> to vector<2x256xf32>
    %262 = arith.mulf %261, %255 : vector<2x256xf32>
    %263 = arith.addf %259, %262 : vector<2x256xf32>
    %c254_i32 = arith.constant 254 : i32
    %264 = tpu.dynamic_rotate %1 by %c254_i32 dim 1 : vector<2x256xf32>, i32 -> vector<2x256xf32>
    %c254_i32_161 = arith.constant 254 : i32
    %265 = tpu.dynamic_rotate %4 by %c254_i32_161 dim 1 : vector<2x256xf32>, i32 -> vector<2x256xf32>
    %c26 = arith.constant 26 : index
    %c0_162 = arith.constant 0 : index
    %c0_163 = arith.constant 0 : index
    %266 = vector.load %arg1[%c26, %c0_162, %c0_163] : memref<49x2x256xf32, #tpu.memory_space<vmem>>, vector<1x2x256xf32>
    %267 = vector.shape_cast %266 : vector<1x2x256xf32> to vector<2x256xf32>
    %268 = arith.mulf %267, %264 : vector<2x256xf32>
    %269 = arith.addf %263, %268 : vector<2x256xf32>
    %c26_164 = arith.constant 26 : index
    %c0_165 = arith.constant 0 : index
    %c0_166 = arith.constant 0 : index
    %270 = vector.load %arg2[%c26_164, %c0_165, %c0_166] : memref<49x2x256xf32, #tpu.memory_space<vmem>>, vector<1x2x256xf32>
    %271 = vector.shape_cast %270 : vector<1x2x256xf32> to vector<2x256xf32>
    %272 = arith.mulf %271, %265 : vector<2x256xf32>
    %273 = arith.addf %269, %272 : vector<2x256xf32>
    %c253_i32 = arith.constant 253 : i32
    %274 = tpu.dynamic_rotate %1 by %c253_i32 dim 1 : vector<2x256xf32>, i32 -> vector<2x256xf32>
    %c253_i32_167 = arith.constant 253 : i32
    %275 = tpu.dynamic_rotate %4 by %c253_i32_167 dim 1 : vector<2x256xf32>, i32 -> vector<2x256xf32>
    %c27 = arith.constant 27 : index
    %c0_168 = arith.constant 0 : index
    %c0_169 = arith.constant 0 : index
    %276 = vector.load %arg1[%c27, %c0_168, %c0_169] : memref<49x2x256xf32, #tpu.memory_space<vmem>>, vector<1x2x256xf32>
    %277 = vector.shape_cast %276 : vector<1x2x256xf32> to vector<2x256xf32>
    %278 = arith.mulf %277, %274 : vector<2x256xf32>
    %279 = arith.addf %273, %278 : vector<2x256xf32>
    %c27_170 = arith.constant 27 : index
    %c0_171 = arith.constant 0 : index
    %c0_172 = arith.constant 0 : index
    %280 = vector.load %arg2[%c27_170, %c0_171, %c0_172] : memref<49x2x256xf32, #tpu.memory_space<vmem>>, vector<1x2x256xf32>
    %281 = vector.shape_cast %280 : vector<1x2x256xf32> to vector<2x256xf32>
    %282 = arith.mulf %281, %275 : vector<2x256xf32>
    %283 = arith.addf %279, %282 : vector<2x256xf32>
    %c243_i32 = arith.constant 243 : i32
    %284 = tpu.dynamic_rotate %1 by %c243_i32 dim 1 : vector<2x256xf32>, i32 -> vector<2x256xf32>
    %c243_i32_173 = arith.constant 243 : i32
    %285 = tpu.dynamic_rotate %4 by %c243_i32_173 dim 1 : vector<2x256xf32>, i32 -> vector<2x256xf32>
    %c28 = arith.constant 28 : index
    %c0_174 = arith.constant 0 : index
    %c0_175 = arith.constant 0 : index
    %286 = vector.load %arg1[%c28, %c0_174, %c0_175] : memref<49x2x256xf32, #tpu.memory_space<vmem>>, vector<1x2x256xf32>
    %287 = vector.shape_cast %286 : vector<1x2x256xf32> to vector<2x256xf32>
    %288 = arith.mulf %287, %284 : vector<2x256xf32>
    %289 = arith.addf %283, %288 : vector<2x256xf32>
    %c28_176 = arith.constant 28 : index
    %c0_177 = arith.constant 0 : index
    %c0_178 = arith.constant 0 : index
    %290 = vector.load %arg2[%c28_176, %c0_177, %c0_178] : memref<49x2x256xf32, #tpu.memory_space<vmem>>, vector<1x2x256xf32>
    %291 = vector.shape_cast %290 : vector<1x2x256xf32> to vector<2x256xf32>
    %292 = arith.mulf %291, %285 : vector<2x256xf32>
    %293 = arith.addf %289, %292 : vector<2x256xf32>
    %c242_i32 = arith.constant 242 : i32
    %294 = tpu.dynamic_rotate %1 by %c242_i32 dim 1 : vector<2x256xf32>, i32 -> vector<2x256xf32>
    %c242_i32_179 = arith.constant 242 : i32
    %295 = tpu.dynamic_rotate %4 by %c242_i32_179 dim 1 : vector<2x256xf32>, i32 -> vector<2x256xf32>
    %c29 = arith.constant 29 : index
    %c0_180 = arith.constant 0 : index
    %c0_181 = arith.constant 0 : index
    %296 = vector.load %arg1[%c29, %c0_180, %c0_181] : memref<49x2x256xf32, #tpu.memory_space<vmem>>, vector<1x2x256xf32>
    %297 = vector.shape_cast %296 : vector<1x2x256xf32> to vector<2x256xf32>
    %298 = arith.mulf %297, %294 : vector<2x256xf32>
    %299 = arith.addf %293, %298 : vector<2x256xf32>
    %c29_182 = arith.constant 29 : index
    %c0_183 = arith.constant 0 : index
    %c0_184 = arith.constant 0 : index
    %300 = vector.load %arg2[%c29_182, %c0_183, %c0_184] : memref<49x2x256xf32, #tpu.memory_space<vmem>>, vector<1x2x256xf32>
    %301 = vector.shape_cast %300 : vector<1x2x256xf32> to vector<2x256xf32>
    %302 = arith.mulf %301, %295 : vector<2x256xf32>
    %303 = arith.addf %299, %302 : vector<2x256xf32>
    %c241_i32 = arith.constant 241 : i32
    %304 = tpu.dynamic_rotate %1 by %c241_i32 dim 1 : vector<2x256xf32>, i32 -> vector<2x256xf32>
    %c241_i32_185 = arith.constant 241 : i32
    %305 = tpu.dynamic_rotate %4 by %c241_i32_185 dim 1 : vector<2x256xf32>, i32 -> vector<2x256xf32>
    %c30 = arith.constant 30 : index
    %c0_186 = arith.constant 0 : index
    %c0_187 = arith.constant 0 : index
    %306 = vector.load %arg1[%c30, %c0_186, %c0_187] : memref<49x2x256xf32, #tpu.memory_space<vmem>>, vector<1x2x256xf32>
    %307 = vector.shape_cast %306 : vector<1x2x256xf32> to vector<2x256xf32>
    %308 = arith.mulf %307, %304 : vector<2x256xf32>
    %309 = arith.addf %303, %308 : vector<2x256xf32>
    %c30_188 = arith.constant 30 : index
    %c0_189 = arith.constant 0 : index
    %c0_190 = arith.constant 0 : index
    %310 = vector.load %arg2[%c30_188, %c0_189, %c0_190] : memref<49x2x256xf32, #tpu.memory_space<vmem>>, vector<1x2x256xf32>
    %311 = vector.shape_cast %310 : vector<1x2x256xf32> to vector<2x256xf32>
    %312 = arith.mulf %311, %305 : vector<2x256xf32>
    %313 = arith.addf %309, %312 : vector<2x256xf32>
    %c240_i32 = arith.constant 240 : i32
    %314 = tpu.dynamic_rotate %1 by %c240_i32 dim 1 : vector<2x256xf32>, i32 -> vector<2x256xf32>
    %c240_i32_191 = arith.constant 240 : i32
    %315 = tpu.dynamic_rotate %4 by %c240_i32_191 dim 1 : vector<2x256xf32>, i32 -> vector<2x256xf32>
    %c31 = arith.constant 31 : index
    %c0_192 = arith.constant 0 : index
    %c0_193 = arith.constant 0 : index
    %316 = vector.load %arg1[%c31, %c0_192, %c0_193] : memref<49x2x256xf32, #tpu.memory_space<vmem>>, vector<1x2x256xf32>
    %317 = vector.shape_cast %316 : vector<1x2x256xf32> to vector<2x256xf32>
    %318 = arith.mulf %317, %314 : vector<2x256xf32>
    %319 = arith.addf %313, %318 : vector<2x256xf32>
    %c31_194 = arith.constant 31 : index
    %c0_195 = arith.constant 0 : index
    %c0_196 = arith.constant 0 : index
    %320 = vector.load %arg2[%c31_194, %c0_195, %c0_196] : memref<49x2x256xf32, #tpu.memory_space<vmem>>, vector<1x2x256xf32>
    %321 = vector.shape_cast %320 : vector<1x2x256xf32> to vector<2x256xf32>
    %322 = arith.mulf %321, %315 : vector<2x256xf32>
    %323 = arith.addf %319, %322 : vector<2x256xf32>
    %c239_i32 = arith.constant 239 : i32
    %324 = tpu.dynamic_rotate %1 by %c239_i32 dim 1 : vector<2x256xf32>, i32 -> vector<2x256xf32>
    %c239_i32_197 = arith.constant 239 : i32
    %325 = tpu.dynamic_rotate %4 by %c239_i32_197 dim 1 : vector<2x256xf32>, i32 -> vector<2x256xf32>
    %c32 = arith.constant 32 : index
    %c0_198 = arith.constant 0 : index
    %c0_199 = arith.constant 0 : index
    %326 = vector.load %arg1[%c32, %c0_198, %c0_199] : memref<49x2x256xf32, #tpu.memory_space<vmem>>, vector<1x2x256xf32>
    %327 = vector.shape_cast %326 : vector<1x2x256xf32> to vector<2x256xf32>
    %328 = arith.mulf %327, %324 : vector<2x256xf32>
    %329 = arith.addf %323, %328 : vector<2x256xf32>
    %c32_200 = arith.constant 32 : index
    %c0_201 = arith.constant 0 : index
    %c0_202 = arith.constant 0 : index
    %330 = vector.load %arg2[%c32_200, %c0_201, %c0_202] : memref<49x2x256xf32, #tpu.memory_space<vmem>>, vector<1x2x256xf32>
    %331 = vector.shape_cast %330 : vector<1x2x256xf32> to vector<2x256xf32>
    %332 = arith.mulf %331, %325 : vector<2x256xf32>
    %333 = arith.addf %329, %332 : vector<2x256xf32>
    %c238_i32 = arith.constant 238 : i32
    %334 = tpu.dynamic_rotate %1 by %c238_i32 dim 1 : vector<2x256xf32>, i32 -> vector<2x256xf32>
    %c238_i32_203 = arith.constant 238 : i32
    %335 = tpu.dynamic_rotate %4 by %c238_i32_203 dim 1 : vector<2x256xf32>, i32 -> vector<2x256xf32>
    %c33 = arith.constant 33 : index
    %c0_204 = arith.constant 0 : index
    %c0_205 = arith.constant 0 : index
    %336 = vector.load %arg1[%c33, %c0_204, %c0_205] : memref<49x2x256xf32, #tpu.memory_space<vmem>>, vector<1x2x256xf32>
    %337 = vector.shape_cast %336 : vector<1x2x256xf32> to vector<2x256xf32>
    %338 = arith.mulf %337, %334 : vector<2x256xf32>
    %339 = arith.addf %333, %338 : vector<2x256xf32>
    %c33_206 = arith.constant 33 : index
    %c0_207 = arith.constant 0 : index
    %c0_208 = arith.constant 0 : index
    %340 = vector.load %arg2[%c33_206, %c0_207, %c0_208] : memref<49x2x256xf32, #tpu.memory_space<vmem>>, vector<1x2x256xf32>
    %341 = vector.shape_cast %340 : vector<1x2x256xf32> to vector<2x256xf32>
    %342 = arith.mulf %341, %335 : vector<2x256xf32>
    %343 = arith.addf %339, %342 : vector<2x256xf32>
    %c237_i32 = arith.constant 237 : i32
    %344 = tpu.dynamic_rotate %1 by %c237_i32 dim 1 : vector<2x256xf32>, i32 -> vector<2x256xf32>
    %c237_i32_209 = arith.constant 237 : i32
    %345 = tpu.dynamic_rotate %4 by %c237_i32_209 dim 1 : vector<2x256xf32>, i32 -> vector<2x256xf32>
    %c34 = arith.constant 34 : index
    %c0_210 = arith.constant 0 : index
    %c0_211 = arith.constant 0 : index
    %346 = vector.load %arg1[%c34, %c0_210, %c0_211] : memref<49x2x256xf32, #tpu.memory_space<vmem>>, vector<1x2x256xf32>
    %347 = vector.shape_cast %346 : vector<1x2x256xf32> to vector<2x256xf32>
    %348 = arith.mulf %347, %344 : vector<2x256xf32>
    %349 = arith.addf %343, %348 : vector<2x256xf32>
    %c34_212 = arith.constant 34 : index
    %c0_213 = arith.constant 0 : index
    %c0_214 = arith.constant 0 : index
    %350 = vector.load %arg2[%c34_212, %c0_213, %c0_214] : memref<49x2x256xf32, #tpu.memory_space<vmem>>, vector<1x2x256xf32>
    %351 = vector.shape_cast %350 : vector<1x2x256xf32> to vector<2x256xf32>
    %352 = arith.mulf %351, %345 : vector<2x256xf32>
    %353 = arith.addf %349, %352 : vector<2x256xf32>
    %c227_i32 = arith.constant 227 : i32
    %354 = tpu.dynamic_rotate %1 by %c227_i32 dim 1 : vector<2x256xf32>, i32 -> vector<2x256xf32>
    %c227_i32_215 = arith.constant 227 : i32
    %355 = tpu.dynamic_rotate %4 by %c227_i32_215 dim 1 : vector<2x256xf32>, i32 -> vector<2x256xf32>
    %c35 = arith.constant 35 : index
    %c0_216 = arith.constant 0 : index
    %c0_217 = arith.constant 0 : index
    %356 = vector.load %arg1[%c35, %c0_216, %c0_217] : memref<49x2x256xf32, #tpu.memory_space<vmem>>, vector<1x2x256xf32>
    %357 = vector.shape_cast %356 : vector<1x2x256xf32> to vector<2x256xf32>
    %358 = arith.mulf %357, %354 : vector<2x256xf32>
    %359 = arith.addf %353, %358 : vector<2x256xf32>
    %c35_218 = arith.constant 35 : index
    %c0_219 = arith.constant 0 : index
    %c0_220 = arith.constant 0 : index
    %360 = vector.load %arg2[%c35_218, %c0_219, %c0_220] : memref<49x2x256xf32, #tpu.memory_space<vmem>>, vector<1x2x256xf32>
    %361 = vector.shape_cast %360 : vector<1x2x256xf32> to vector<2x256xf32>
    %362 = arith.mulf %361, %355 : vector<2x256xf32>
    %363 = arith.addf %359, %362 : vector<2x256xf32>
    %c226_i32 = arith.constant 226 : i32
    %364 = tpu.dynamic_rotate %1 by %c226_i32 dim 1 : vector<2x256xf32>, i32 -> vector<2x256xf32>
    %c226_i32_221 = arith.constant 226 : i32
    %365 = tpu.dynamic_rotate %4 by %c226_i32_221 dim 1 : vector<2x256xf32>, i32 -> vector<2x256xf32>
    %c36 = arith.constant 36 : index
    %c0_222 = arith.constant 0 : index
    %c0_223 = arith.constant 0 : index
    %366 = vector.load %arg1[%c36, %c0_222, %c0_223] : memref<49x2x256xf32, #tpu.memory_space<vmem>>, vector<1x2x256xf32>
    %367 = vector.shape_cast %366 : vector<1x2x256xf32> to vector<2x256xf32>
    %368 = arith.mulf %367, %364 : vector<2x256xf32>
    %369 = arith.addf %363, %368 : vector<2x256xf32>
    %c36_224 = arith.constant 36 : index
    %c0_225 = arith.constant 0 : index
    %c0_226 = arith.constant 0 : index
    %370 = vector.load %arg2[%c36_224, %c0_225, %c0_226] : memref<49x2x256xf32, #tpu.memory_space<vmem>>, vector<1x2x256xf32>
    %371 = vector.shape_cast %370 : vector<1x2x256xf32> to vector<2x256xf32>
    %372 = arith.mulf %371, %365 : vector<2x256xf32>
    %373 = arith.addf %369, %372 : vector<2x256xf32>
    %c225_i32 = arith.constant 225 : i32
    %374 = tpu.dynamic_rotate %1 by %c225_i32 dim 1 : vector<2x256xf32>, i32 -> vector<2x256xf32>
    %c225_i32_227 = arith.constant 225 : i32
    %375 = tpu.dynamic_rotate %4 by %c225_i32_227 dim 1 : vector<2x256xf32>, i32 -> vector<2x256xf32>
    %c37 = arith.constant 37 : index
    %c0_228 = arith.constant 0 : index
    %c0_229 = arith.constant 0 : index
    %376 = vector.load %arg1[%c37, %c0_228, %c0_229] : memref<49x2x256xf32, #tpu.memory_space<vmem>>, vector<1x2x256xf32>
    %377 = vector.shape_cast %376 : vector<1x2x256xf32> to vector<2x256xf32>
    %378 = arith.mulf %377, %374 : vector<2x256xf32>
    %379 = arith.addf %373, %378 : vector<2x256xf32>
    %c37_230 = arith.constant 37 : index
    %c0_231 = arith.constant 0 : index
    %c0_232 = arith.constant 0 : index
    %380 = vector.load %arg2[%c37_230, %c0_231, %c0_232] : memref<49x2x256xf32, #tpu.memory_space<vmem>>, vector<1x2x256xf32>
    %381 = vector.shape_cast %380 : vector<1x2x256xf32> to vector<2x256xf32>
    %382 = arith.mulf %381, %375 : vector<2x256xf32>
    %383 = arith.addf %379, %382 : vector<2x256xf32>
    %c224_i32 = arith.constant 224 : i32
    %384 = tpu.dynamic_rotate %1 by %c224_i32 dim 1 : vector<2x256xf32>, i32 -> vector<2x256xf32>
    %c224_i32_233 = arith.constant 224 : i32
    %385 = tpu.dynamic_rotate %4 by %c224_i32_233 dim 1 : vector<2x256xf32>, i32 -> vector<2x256xf32>
    %c38 = arith.constant 38 : index
    %c0_234 = arith.constant 0 : index
    %c0_235 = arith.constant 0 : index
    %386 = vector.load %arg1[%c38, %c0_234, %c0_235] : memref<49x2x256xf32, #tpu.memory_space<vmem>>, vector<1x2x256xf32>
    %387 = vector.shape_cast %386 : vector<1x2x256xf32> to vector<2x256xf32>
    %388 = arith.mulf %387, %384 : vector<2x256xf32>
    %389 = arith.addf %383, %388 : vector<2x256xf32>
    %c38_236 = arith.constant 38 : index
    %c0_237 = arith.constant 0 : index
    %c0_238 = arith.constant 0 : index
    %390 = vector.load %arg2[%c38_236, %c0_237, %c0_238] : memref<49x2x256xf32, #tpu.memory_space<vmem>>, vector<1x2x256xf32>
    %391 = vector.shape_cast %390 : vector<1x2x256xf32> to vector<2x256xf32>
    %392 = arith.mulf %391, %385 : vector<2x256xf32>
    %393 = arith.addf %389, %392 : vector<2x256xf32>
    %c223_i32 = arith.constant 223 : i32
    %394 = tpu.dynamic_rotate %1 by %c223_i32 dim 1 : vector<2x256xf32>, i32 -> vector<2x256xf32>
    %c223_i32_239 = arith.constant 223 : i32
    %395 = tpu.dynamic_rotate %4 by %c223_i32_239 dim 1 : vector<2x256xf32>, i32 -> vector<2x256xf32>
    %c39 = arith.constant 39 : index
    %c0_240 = arith.constant 0 : index
    %c0_241 = arith.constant 0 : index
    %396 = vector.load %arg1[%c39, %c0_240, %c0_241] : memref<49x2x256xf32, #tpu.memory_space<vmem>>, vector<1x2x256xf32>
    %397 = vector.shape_cast %396 : vector<1x2x256xf32> to vector<2x256xf32>
    %398 = arith.mulf %397, %394 : vector<2x256xf32>
    %399 = arith.addf %393, %398 : vector<2x256xf32>
    %c39_242 = arith.constant 39 : index
    %c0_243 = arith.constant 0 : index
    %c0_244 = arith.constant 0 : index
    %400 = vector.load %arg2[%c39_242, %c0_243, %c0_244] : memref<49x2x256xf32, #tpu.memory_space<vmem>>, vector<1x2x256xf32>
    %401 = vector.shape_cast %400 : vector<1x2x256xf32> to vector<2x256xf32>
    %402 = arith.mulf %401, %395 : vector<2x256xf32>
    %403 = arith.addf %399, %402 : vector<2x256xf32>
    %c222_i32 = arith.constant 222 : i32
    %404 = tpu.dynamic_rotate %1 by %c222_i32 dim 1 : vector<2x256xf32>, i32 -> vector<2x256xf32>
    %c222_i32_245 = arith.constant 222 : i32
    %405 = tpu.dynamic_rotate %4 by %c222_i32_245 dim 1 : vector<2x256xf32>, i32 -> vector<2x256xf32>
    %c40 = arith.constant 40 : index
    %c0_246 = arith.constant 0 : index
    %c0_247 = arith.constant 0 : index
    %406 = vector.load %arg1[%c40, %c0_246, %c0_247] : memref<49x2x256xf32, #tpu.memory_space<vmem>>, vector<1x2x256xf32>
    %407 = vector.shape_cast %406 : vector<1x2x256xf32> to vector<2x256xf32>
    %408 = arith.mulf %407, %404 : vector<2x256xf32>
    %409 = arith.addf %403, %408 : vector<2x256xf32>
    %c40_248 = arith.constant 40 : index
    %c0_249 = arith.constant 0 : index
    %c0_250 = arith.constant 0 : index
    %410 = vector.load %arg2[%c40_248, %c0_249, %c0_250] : memref<49x2x256xf32, #tpu.memory_space<vmem>>, vector<1x2x256xf32>
    %411 = vector.shape_cast %410 : vector<1x2x256xf32> to vector<2x256xf32>
    %412 = arith.mulf %411, %405 : vector<2x256xf32>
    %413 = arith.addf %409, %412 : vector<2x256xf32>
    %c221_i32 = arith.constant 221 : i32
    %414 = tpu.dynamic_rotate %1 by %c221_i32 dim 1 : vector<2x256xf32>, i32 -> vector<2x256xf32>
    %c221_i32_251 = arith.constant 221 : i32
    %415 = tpu.dynamic_rotate %4 by %c221_i32_251 dim 1 : vector<2x256xf32>, i32 -> vector<2x256xf32>
    %c41 = arith.constant 41 : index
    %c0_252 = arith.constant 0 : index
    %c0_253 = arith.constant 0 : index
    %416 = vector.load %arg1[%c41, %c0_252, %c0_253] : memref<49x2x256xf32, #tpu.memory_space<vmem>>, vector<1x2x256xf32>
    %417 = vector.shape_cast %416 : vector<1x2x256xf32> to vector<2x256xf32>
    %418 = arith.mulf %417, %414 : vector<2x256xf32>
    %419 = arith.addf %413, %418 : vector<2x256xf32>
    %c41_254 = arith.constant 41 : index
    %c0_255 = arith.constant 0 : index
    %c0_256 = arith.constant 0 : index
    %420 = vector.load %arg2[%c41_254, %c0_255, %c0_256] : memref<49x2x256xf32, #tpu.memory_space<vmem>>, vector<1x2x256xf32>
    %421 = vector.shape_cast %420 : vector<1x2x256xf32> to vector<2x256xf32>
    %422 = arith.mulf %421, %415 : vector<2x256xf32>
    %423 = arith.addf %419, %422 : vector<2x256xf32>
    %c211_i32 = arith.constant 211 : i32
    %424 = tpu.dynamic_rotate %1 by %c211_i32 dim 1 : vector<2x256xf32>, i32 -> vector<2x256xf32>
    %c211_i32_257 = arith.constant 211 : i32
    %425 = tpu.dynamic_rotate %4 by %c211_i32_257 dim 1 : vector<2x256xf32>, i32 -> vector<2x256xf32>
    %c42 = arith.constant 42 : index
    %c0_258 = arith.constant 0 : index
    %c0_259 = arith.constant 0 : index
    %426 = vector.load %arg1[%c42, %c0_258, %c0_259] : memref<49x2x256xf32, #tpu.memory_space<vmem>>, vector<1x2x256xf32>
    %427 = vector.shape_cast %426 : vector<1x2x256xf32> to vector<2x256xf32>
    %428 = arith.mulf %427, %424 : vector<2x256xf32>
    %429 = arith.addf %423, %428 : vector<2x256xf32>
    %c42_260 = arith.constant 42 : index
    %c0_261 = arith.constant 0 : index
    %c0_262 = arith.constant 0 : index
    %430 = vector.load %arg2[%c42_260, %c0_261, %c0_262] : memref<49x2x256xf32, #tpu.memory_space<vmem>>, vector<1x2x256xf32>
    %431 = vector.shape_cast %430 : vector<1x2x256xf32> to vector<2x256xf32>
    %432 = arith.mulf %431, %425 : vector<2x256xf32>
    %433 = arith.addf %429, %432 : vector<2x256xf32>
    %c210_i32 = arith.constant 210 : i32
    %434 = tpu.dynamic_rotate %1 by %c210_i32 dim 1 : vector<2x256xf32>, i32 -> vector<2x256xf32>
    %c210_i32_263 = arith.constant 210 : i32
    %435 = tpu.dynamic_rotate %4 by %c210_i32_263 dim 1 : vector<2x256xf32>, i32 -> vector<2x256xf32>
    %c43 = arith.constant 43 : index
    %c0_264 = arith.constant 0 : index
    %c0_265 = arith.constant 0 : index
    %436 = vector.load %arg1[%c43, %c0_264, %c0_265] : memref<49x2x256xf32, #tpu.memory_space<vmem>>, vector<1x2x256xf32>
    %437 = vector.shape_cast %436 : vector<1x2x256xf32> to vector<2x256xf32>
    %438 = arith.mulf %437, %434 : vector<2x256xf32>
    %439 = arith.addf %433, %438 : vector<2x256xf32>
    %c43_266 = arith.constant 43 : index
    %c0_267 = arith.constant 0 : index
    %c0_268 = arith.constant 0 : index
    %440 = vector.load %arg2[%c43_266, %c0_267, %c0_268] : memref<49x2x256xf32, #tpu.memory_space<vmem>>, vector<1x2x256xf32>
    %441 = vector.shape_cast %440 : vector<1x2x256xf32> to vector<2x256xf32>
    %442 = arith.mulf %441, %435 : vector<2x256xf32>
    %443 = arith.addf %439, %442 : vector<2x256xf32>
    %c209_i32 = arith.constant 209 : i32
    %444 = tpu.dynamic_rotate %1 by %c209_i32 dim 1 : vector<2x256xf32>, i32 -> vector<2x256xf32>
    %c209_i32_269 = arith.constant 209 : i32
    %445 = tpu.dynamic_rotate %4 by %c209_i32_269 dim 1 : vector<2x256xf32>, i32 -> vector<2x256xf32>
    %c44 = arith.constant 44 : index
    %c0_270 = arith.constant 0 : index
    %c0_271 = arith.constant 0 : index
    %446 = vector.load %arg1[%c44, %c0_270, %c0_271] : memref<49x2x256xf32, #tpu.memory_space<vmem>>, vector<1x2x256xf32>
    %447 = vector.shape_cast %446 : vector<1x2x256xf32> to vector<2x256xf32>
    %448 = arith.mulf %447, %444 : vector<2x256xf32>
    %449 = arith.addf %443, %448 : vector<2x256xf32>
    %c44_272 = arith.constant 44 : index
    %c0_273 = arith.constant 0 : index
    %c0_274 = arith.constant 0 : index
    %450 = vector.load %arg2[%c44_272, %c0_273, %c0_274] : memref<49x2x256xf32, #tpu.memory_space<vmem>>, vector<1x2x256xf32>
    %451 = vector.shape_cast %450 : vector<1x2x256xf32> to vector<2x256xf32>
    %452 = arith.mulf %451, %445 : vector<2x256xf32>
    %453 = arith.addf %449, %452 : vector<2x256xf32>
    %c208_i32 = arith.constant 208 : i32
    %454 = tpu.dynamic_rotate %1 by %c208_i32 dim 1 : vector<2x256xf32>, i32 -> vector<2x256xf32>
    %c208_i32_275 = arith.constant 208 : i32
    %455 = tpu.dynamic_rotate %4 by %c208_i32_275 dim 1 : vector<2x256xf32>, i32 -> vector<2x256xf32>
    %c45 = arith.constant 45 : index
    %c0_276 = arith.constant 0 : index
    %c0_277 = arith.constant 0 : index
    %456 = vector.load %arg1[%c45, %c0_276, %c0_277] : memref<49x2x256xf32, #tpu.memory_space<vmem>>, vector<1x2x256xf32>
    %457 = vector.shape_cast %456 : vector<1x2x256xf32> to vector<2x256xf32>
    %458 = arith.mulf %457, %454 : vector<2x256xf32>
    %459 = arith.addf %453, %458 : vector<2x256xf32>
    %c45_278 = arith.constant 45 : index
    %c0_279 = arith.constant 0 : index
    %c0_280 = arith.constant 0 : index
    %460 = vector.load %arg2[%c45_278, %c0_279, %c0_280] : memref<49x2x256xf32, #tpu.memory_space<vmem>>, vector<1x2x256xf32>
    %461 = vector.shape_cast %460 : vector<1x2x256xf32> to vector<2x256xf32>
    %462 = arith.mulf %461, %455 : vector<2x256xf32>
    %463 = arith.addf %459, %462 : vector<2x256xf32>
    %c207_i32 = arith.constant 207 : i32
    %464 = tpu.dynamic_rotate %1 by %c207_i32 dim 1 : vector<2x256xf32>, i32 -> vector<2x256xf32>
    %c207_i32_281 = arith.constant 207 : i32
    %465 = tpu.dynamic_rotate %4 by %c207_i32_281 dim 1 : vector<2x256xf32>, i32 -> vector<2x256xf32>
    %c46 = arith.constant 46 : index
    %c0_282 = arith.constant 0 : index
    %c0_283 = arith.constant 0 : index
    %466 = vector.load %arg1[%c46, %c0_282, %c0_283] : memref<49x2x256xf32, #tpu.memory_space<vmem>>, vector<1x2x256xf32>
    %467 = vector.shape_cast %466 : vector<1x2x256xf32> to vector<2x256xf32>
    %468 = arith.mulf %467, %464 : vector<2x256xf32>
    %469 = arith.addf %463, %468 : vector<2x256xf32>
    %c46_284 = arith.constant 46 : index
    %c0_285 = arith.constant 0 : index
    %c0_286 = arith.constant 0 : index
    %470 = vector.load %arg2[%c46_284, %c0_285, %c0_286] : memref<49x2x256xf32, #tpu.memory_space<vmem>>, vector<1x2x256xf32>
    %471 = vector.shape_cast %470 : vector<1x2x256xf32> to vector<2x256xf32>
    %472 = arith.mulf %471, %465 : vector<2x256xf32>
    %473 = arith.addf %469, %472 : vector<2x256xf32>
    %c206_i32 = arith.constant 206 : i32
    %474 = tpu.dynamic_rotate %1 by %c206_i32 dim 1 : vector<2x256xf32>, i32 -> vector<2x256xf32>
    %c206_i32_287 = arith.constant 206 : i32
    %475 = tpu.dynamic_rotate %4 by %c206_i32_287 dim 1 : vector<2x256xf32>, i32 -> vector<2x256xf32>
    %c47 = arith.constant 47 : index
    %c0_288 = arith.constant 0 : index
    %c0_289 = arith.constant 0 : index
    %476 = vector.load %arg1[%c47, %c0_288, %c0_289] : memref<49x2x256xf32, #tpu.memory_space<vmem>>, vector<1x2x256xf32>
    %477 = vector.shape_cast %476 : vector<1x2x256xf32> to vector<2x256xf32>
    %478 = arith.mulf %477, %474 : vector<2x256xf32>
    %479 = arith.addf %473, %478 : vector<2x256xf32>
    %c47_290 = arith.constant 47 : index
    %c0_291 = arith.constant 0 : index
    %c0_292 = arith.constant 0 : index
    %480 = vector.load %arg2[%c47_290, %c0_291, %c0_292] : memref<49x2x256xf32, #tpu.memory_space<vmem>>, vector<1x2x256xf32>
    %481 = vector.shape_cast %480 : vector<1x2x256xf32> to vector<2x256xf32>
    %482 = arith.mulf %481, %475 : vector<2x256xf32>
    %483 = arith.addf %479, %482 : vector<2x256xf32>
    %c205_i32 = arith.constant 205 : i32
    %484 = tpu.dynamic_rotate %1 by %c205_i32 dim 1 : vector<2x256xf32>, i32 -> vector<2x256xf32>
    %c205_i32_293 = arith.constant 205 : i32
    %485 = tpu.dynamic_rotate %4 by %c205_i32_293 dim 1 : vector<2x256xf32>, i32 -> vector<2x256xf32>
    %c48 = arith.constant 48 : index
    %c0_294 = arith.constant 0 : index
    %c0_295 = arith.constant 0 : index
    %486 = vector.load %arg1[%c48, %c0_294, %c0_295] : memref<49x2x256xf32, #tpu.memory_space<vmem>>, vector<1x2x256xf32>
    %487 = vector.shape_cast %486 : vector<1x2x256xf32> to vector<2x256xf32>
    %488 = arith.mulf %487, %484 : vector<2x256xf32>
    %489 = arith.addf %483, %488 : vector<2x256xf32>
    %c48_296 = arith.constant 48 : index
    %c0_297 = arith.constant 0 : index
    %c0_298 = arith.constant 0 : index
    %490 = vector.load %arg2[%c48_296, %c0_297, %c0_298] : memref<49x2x256xf32, #tpu.memory_space<vmem>>, vector<1x2x256xf32>
    %491 = vector.shape_cast %490 : vector<1x2x256xf32> to vector<2x256xf32>
    %492 = arith.mulf %491, %485 : vector<2x256xf32>
    %493 = arith.addf %489, %492 : vector<2x256xf32>
    %c0_299 = arith.constant 0 : index
    %494 = memref.load %arg3[%c0_299] : memref<1xf32, #tpu.memory_space<smem>>
    %495 = vector.broadcast %494 : f32 to vector<2x256xf32>
    %496 = arith.addf %493, %495 : vector<2x256xf32>
    %497 = arith.negf %496 : vector<2x256xf32>
    %498 = math.exp %497 : vector<2x256xf32>
    %cst_300 = arith.constant 1.000000e+00 : f32
    %499 = vector.broadcast %cst_300 : f32 to vector<2x256xf32>
    %500 = arith.addf %499, %498 : vector<2x256xf32>
    %501 = arith.divf %499, %500 : vector<2x256xf32>
    %c0_301 = arith.constant 0 : index
    %c0_302 = arith.constant 0 : index
    %c0_303 = arith.constant 0 : index
    %502 = vector.load %arg4[%c0_301, %c0_302, %c0_303] : memref<2x4x256xf32, #tpu.memory_space<vmem>>, vector<2x4x256xf32>
    %503 = vector.shape_cast %501 : vector<2x256xf32> to vector<2x1x256xf32>
    %504 = vector.broadcast %503 : vector<2x1x256xf32> to vector<2x4x256xf32>
    %505 = arith.mulf %502, %504 : vector<2x4x256xf32>
    %c0_304 = arith.constant 0 : index
    %c0_305 = arith.constant 0 : index
    %c0_306 = arith.constant 0 : index
    %506 = vector.load %arg5[%c0_304, %c0_305, %c0_306] : memref<2x4x256xf32, #tpu.memory_space<vmem>>, vector<2x4x256xf32>
    tpu.vector_store %arg5[%c0_304, %c0_305, %c0_306], %505 {strides = array<i32>} : memref<2x4x256xf32, #tpu.memory_space<vmem>>, vector<2x4x256xf32>,
    return
  }
  func.func @transform_0(%arg0: i32) -> (i32, i32, i32) {
    %c0_i32 = arith.constant 0 : i32
    %c0_i32_0 = arith.constant 0 : i32
    %c0_i32_1 = arith.constant 0 : i32
    %c0_i32_2 = arith.constant 0 : i32
    return %c0_i32, %c0_i32_0, %c0_i32_1 : i32, i32, i32
  }
  func.func @transform_1(%arg0: i32) -> (i32, i32, i32) {
    %c0_i32 = arith.constant 0 : i32
    %c0_i32_0 = arith.constant 0 : i32
    %c0_i32_1 = arith.constant 0 : i32
    %c0_i32_2 = arith.constant 0 : i32
    return %c0_i32, %c0_i32_0, %c0_i32_1 : i32, i32, i32
  }
  func.func @transform_2(%arg0: i32) -> i32 {
    %c0_i32 = arith.constant 0 : i32
    %c0_i32_0 = arith.constant 0 : i32
    return %c0_i32 : i32
  }
  func.func @transform_3(%arg0: i32) -> (i32, i32, i32) {
    %c0_i32 = arith.constant 0 : i32
    %c0_i32_0 = arith.constant 0 : i32
    %c0_i32_1 = arith.constant 0 : i32
    return %arg0, %c0_i32, %c0_i32_0 : i32, i32, i32
  }
  func.func @transform_4(%arg0: i32) -> (i32, i32, i32) {
    %c0_i32 = arith.constant 0 : i32
    %c0_i32_0 = arith.constant 0 : i32
    %c0_i32_1 = arith.constant 0 : i32
    return %arg0, %c0_i32, %c0_i32_0 : i32, i32, i32
  }
}

</mosaic_0001>

<llo_original>
// kernel: tpu_custom_call.1
$region0: #{tpu_custom_call.1}
  #allocation0 [shape = 'u32[]', space=smem, size = 0x4, offset = 0x4, fixed_abs, tag = 'smem constant byte address 0x4 - core index']
  #allocation1 [shape = 'u32[144,128]{1,0:T(1,128)}', space=vmem, size = 0x12000, scoped, tag = 'internal scratch']
  #allocation2 [shape = 'f32[1]{0:T(128)S(6)}', space=smem, size = 0x200, scoped, tag = 'scoped memory for tpu_custom_call.1']
  %s0 = inlined_call_operand.hbm [shape: f32[49,2,256], index: 0, kind: input, shape index: {}]
  %s1 = inlined_call_operand.hbm [shape: f32[49,2,256], index: 1, kind: input, shape index: {}]
  %s2 = inlined_call_operand.<no memory space> [shape: f32[1], index: 2, kind: input, shape index: {}]
  %s3 = inlined_call_operand.hbm [shape: f32[2,4,256], index: 3, kind: input, shape index: {}]
  %s4 = inlined_call_operand.hbm [shape: f32[2,4,256], index: 4, kind: output, shape index: {}]
  %s5 = sld [smem:[#allocation0]]
  $region38: #{tpu_custom_call.1} parent=0
    _
  %s7 = ssub.s32 1, %s5
  %s8 = scalar_select 0, %s7, %s5
  %9 = sst [smem:[#allocation2]] %s2
  $region1: #{tpu_custom_call.1} parent=0
    #allocation3 [shape = 'u8[100352]{0}', space=vmem, size = 0x18800, scoped, tag = 'input window, operand 0, single buffered']
    #allocation4 [shape = 's32[1]{0}', space=sflag, size = 0x4, scoped, tag = 'scoped memory for tpu_custom_call.1']
    #allocation5 [shape = 's32[1]{0}', space=sflag, size = 0x4, scoped, tag = 'scoped memory for tpu_custom_call.1']
    #allocation6 [shape = 'u8[100352]{0}', space=vmem, size = 0x18800, scoped, tag = 'input window, operand 1, single buffered']
    #allocation7 [shape = 's32[1]{0}', space=sflag, size = 0x4, scoped, tag = 'scoped memory for tpu_custom_call.1']
    #allocation8 [shape = 'u8[8192]{0}', space=vmem, size = 0x2000, scoped, tag = 'input window, operand 3, single buffered']
    #allocation9 [shape = 'u8[8192]{0}', space=vmem, size = 0x2000, scoped, tag = 'output window, operand 0, single buffered']
    %10 = vsyncpa [#allocation4], 0
    %11 = vsyncpa [#allocation7], 0
    %12 = vsyncpa [#allocation5], 0
    // Predicated region
    $region2: #{tpu_custom_call.1} parent=1 // pred_check
      _
    $region3: #{tpu_custom_call.1} parent=1 // pred_check_branch
      %14 = sbr.rel (0) target = $region5
    $region4: #{tpu_custom_call.1} parent=1 // pred_region
      %s16 = ssub.s32 3136, 3136
      %17 = vsyncadd [#allocation4], %s16
      %s18 = sshll.u32 [#allocation3], 4
      %s19 = int_to_ptr.vmem [resolvable:$true] %s18
      %24 = dma.hbm_to_vmem [thread:$0]  %s0, 3136, %s19, [#allocation4], 64, 64, 4
    $region5: #{tpu_custom_call.1} parent=1 // pred_fallthru
      _
    // Predicated region
    $region6: #{tpu_custom_call.1} parent=1 // pred_check
      _
    $region7: #{tpu_custom_call.1} parent=1 // pred_check_branch
      %26 = sbr.rel (0) target = $region9
    $region8: #{tpu_custom_call.1} parent=1 // pred_region
      %s28 = ssub.s32 3136, 3136
      %29 = vsyncadd [#allocation7], %s28
      %s30 = sshll.u32 [#allocation6], 4
      %s31 = int_to_ptr.vmem [resolvable:$true] %s30
      %36 = dma.hbm_to_vmem [thread:$0]  %s1, 3136, %s31, [#allocation7], 64, 64, 4
    $region9: #{tpu_custom_call.1} parent=1 // pred_fallthru
      _
    // Predicated region
    $region10: #{tpu_custom_call.1} parent=1 // pred_check
      _
    $region11: #{tpu_custom_call.1} parent=1 // pred_check_branch
      %38 = sbr.rel (0) target = $region13
    $region12: #{tpu_custom_call.1} parent=1 // pred_region
      _
    $region13: #{tpu_custom_call.1} parent=1 // pred_fallthru
      _
    // Predicated region
    $region14: #{tpu_custom_call.1} parent=1 // pred_check
      _
    $region15: #{tpu_custom_call.1} parent=1 // pred_check_branch
      %40 = sbr.rel (0) target = $region17
    $region16: #{tpu_custom_call.1} parent=1 // pred_region
      %s42 = ssub.s32 256, 256
      %43 = vsyncadd [#allocation7], %s42
      %s44 = sshll.u32 [#allocation8], 4
      %s45 = int_to_ptr.vmem [resolvable:$true] %s44
      %50 = dma.hbm_to_vmem [thread:$0]  %s3, 256, %s45, [#allocation7], 128, 128, 8
    $region17: #{tpu_custom_call.1} parent=1 // pred_fallthru
      _
    // Predicated region
    $region18: #{tpu_custom_call.1} parent=1 // pred_check
      _
    $region19: #{tpu_custom_call.1} parent=1 // pred_check_branch
      %52 = sbr.rel (0) target = $region21
    $region20: #{tpu_custom_call.1} parent=1 // pred_region
      %53 = dma.done [#allocation4], 3136
    $region21: #{tpu_custom_call.1} parent=1 // pred_fallthru
      _
    // Predicated region
    $region22: #{tpu_custom_call.1} parent=1 // pred_check
      _
    $region23: #{tpu_custom_call.1} parent=1 // pred_check_branch
      %55 = sbr.rel (0) target = $region25
    $region24: #{tpu_custom_call.1} parent=1 // pred_region
      %56 = dma.done [#allocation7], 3136
    $region25: #{tpu_custom_call.1} parent=1 // pred_fallthru
      _
    // Predicated region
    $region26: #{tpu_custom_call.1} parent=1 // pred_check
      _
    $region27: #{tpu_custom_call.1} parent=1 // pred_check_branch
      %58 = sbr.rel (0) target = $region29
    $region28: #{tpu_custom_call.1} parent=1 // pred_region
      %59 = dma.done [#allocation7], 256
    $region29: #{tpu_custom_call.1} parent=1 // pred_fallthru
      _
    %v60 = vld [vmem:[#allocation8] sm:$0xff]
    %v61 = vld [vmem:[#allocation8 + $0x8] sm:$0xff]
    %v64 = vcombine.high %v60, %v60
    %v65 = vcombine.high %v61, %v61
    %vm68 = vcmask 1043456
    %v69 = vsel %vm68, %v60, -inf
    %v70 = vrot.slane %v69, 4
    %v71 = vmax.f32 %v69, %v70
    %v72 = vrot.slane %v71, 2
    %v73 = vmax.f32 %v71, %v72
    %v74 = vrot.slane %v73, 1
    %v75 = vmax.f32 %v73, %v74
    %v76 = vsel %vm68, %v64, -inf
    %v77 = vrot.slane %v76, 4
    %v78 = vmax.f32 %v76, %v77
    %v79 = vrot.slane %v78, 2
    %v80 = vmax.f32 %v78, %v79
    %v81 = vrot.slane %v80, 1
    %v82 = vmax.f32 %v80, %v81
    %v83 = vsel %vm68, %v61, -inf
    %v84 = vrot.slane %v83, 4
    %v85 = vmax.f32 %v83, %v84
    %v86 = vrot.slane %v85, 2
    %v87 = vmax.f32 %v85, %v86
    %v88 = vrot.slane %v87, 1
    %v89 = vmax.f32 %v87, %v88
    %v90 = vsel %vm68, %v65, -inf
    %v91 = vrot.slane %v90, 4
    %v92 = vmax.f32 %v90, %v91
    %v93 = vrot.slane %v92, 2
    %v94 = vmax.f32 %v92, %v93
    %v95 = vrot.slane %v94, 1
    %v96 = vmax.f32 %v94, %v95
    %v97 = vsel %vm68, %v60, 0.0
    %v98 = vrot.slane %v97, 4
    %v99 = vadd.f32 %v97, %v98
    %v100 = vrot.slane %v99, 2
    %v101 = vadd.f32 %v99, %v100
    %v102 = vrot.slane %v101, 1
    %v103 = vadd.f32 %v101, %v102
    %v104 = vsel %vm68, %v64, 0.0
    %v105 = vrot.slane %v104, 4
    %v106 = vadd.f32 %v104, %v105
    %v107 = vrot.slane %v106, 2
    %v108 = vadd.f32 %v106, %v107
    %v109 = vrot.slane %v108, 1
    %v110 = vadd.f32 %v108, %v109
    %v111 = vsel %vm68, %v61, 0.0
    %v112 = vrot.slane %v111, 4
    %v113 = vadd.f32 %v111, %v112
    %v114 = vrot.slane %v113, 2
    %v115 = vadd.f32 %v113, %v114
    %v116 = vrot.slane %v115, 1
    %v117 = vadd.f32 %v115, %v116
    %v118 = vsel %vm68, %v65, 0.0
    %v119 = vrot.slane %v118, 4
    %v120 = vadd.f32 %v118, %v119
    %v121 = vrot.slane %v120, 2
    %v122 = vadd.f32 %v120, %v121
    %v123 = vrot.slane %v122, 1
    %v124 = vadd.f32 %v122, %v123
    %v125 = vmul.f32 %v103, 0.25
    %v126 = vmul.f32 %v110, 0.25
    %v127 = vmul.f32 %v117, 0.25
    %v128 = vmul.f32 %v124, 0.25
    %vm133 = vcmask 1041409
    %v134 = vsel %vm133, %v89, %v75
    %v135 = vsel %vm133, %v96, %v82
    %138 = vrot.lane.b32.xlu0 %v134, 51
    %v139 = vpop.permute.xlu0 %138
    %140 = vrot.lane.b32.xlu0 %v135, 51
    %v141 = vpop.permute.xlu0 %140
    %v142 = vlaneseq
    %v143 = vand.u32 %v142, 127
    %vm144 = vcmp.lt.s32.totalorder %v143, 51
    %v145 = vsel %vm144, %v139, %v141
    %v146 = vsel %vm144, %v141, %v139
    %v151 = vsel %vm133, %v127, %v125
    %v152 = vsel %vm133, %v128, %v126
    %155 = vrot.lane.b32.xlu0 %v151, 51
    %v156 = vpop.permute.xlu0 %155
    %157 = vrot.lane.b32.xlu0 %v152, 51
    %v158 = vpop.permute.xlu0 %157
    %v159 = vsel %vm144, %v156, %v158
    %v160 = vsel %vm144, %v158, %v156
    %v161 = vld [vmem:[#allocation3] sm:$0xf]
    %v164 = vcombine.low %v146, %v145
    %v166 = vunpack.c.l.s4 1983009808
    %v167 = vunpack.c.0.s8 %v166
    %v168 = vlaneseq
    %v169 = vshrl.u32 %v168, 7
    %v170 = vsub.s32 %v167, %v169
    %v171 = vrot.slane %v164, %v170
    %v173 = vmul.f32 %v161, %v171
    %v174 = vadd.f32 %v173, 0.0
    %v175 = vld [vmem:[#allocation6] sm:$0xf]
    %v178 = vcombine.low %v160, %v159
    %v180 = vunpack.c.l.s4 1983009808
    %v181 = vunpack.c.0.s8 %v180
    %v182 = vlaneseq
    %v183 = vshrl.u32 %v182, 7
    %v184 = vsub.s32 %v181, %v183
    %v185 = vrot.slane %v178, %v184
    %v187 = vmul.f32 %v175, %v185
    %v188 = vadd.f32 %v174, %v187
    %189 = vrot.lane.b32.xlu0 %v134, 50
    %v190 = vpop.permute.xlu0 %189
    %191 = vrot.lane.b32.xlu0 %v135, 50
    %v192 = vpop.permute.xlu0 %191
    %vm193 = vcmp.lt.s32.totalorder %v143, 50
    %v194 = vsel %vm193, %v190, %v192
    %v195 = vsel %vm193, %v192, %v190
    %196 = vrot.lane.b32.xlu0 %v151, 50
    %v197 = vpop.permute.xlu0 %196
    %198 = vrot.lane.b32.xlu0 %v152, 50
    %v199 = vpop.permute.xlu0 %198
    %v200 = vsel %vm193, %v197, %v199
    %v201 = vsel %vm193, %v199, %v197
    %s202 = scalar_lea.vmem [#allocation3], 4
    %v203 = vld [vmem:[%s202] sm:$0xf]
    %v206 = vcombine.low %v195, %v194
    %v208 = vunpack.c.l.s4 1983009808
    %v209 = vunpack.c.0.s8 %v208
    %v210 = vlaneseq
    %v211 = vshrl.u32 %v210, 7
    %v212 = vsub.s32 %v209, %v211
    %v213 = vrot.slane %v206, %v212
    %v215 = vmul.f32 %v203, %v213
    %v216 = vadd.f32 %v188, %v215
    %s217 = scalar_lea.vmem [#allocation6], 4
    %v218 = vld [vmem:[%s217] sm:$0xf]
    %v221 = vcombine.low %v201, %v200
    %v223 = vunpack.c.l.s4 1983009808
    %v224 = vunpack.c.0.s8 %v223
    %v225 = vlaneseq
    %v226 = vshrl.u32 %v225, 7
    %v227 = vsub.s32 %v224, %v226
    %v228 = vrot.slane %v221, %v227
    %v230 = vmul.f32 %v218, %v228
    %v231 = vadd.f32 %v216, %v230
    %232 = vrot.lane.b32.xlu0 %v134, 49
    %v233 = vpop.permute.xlu0 %232
    %234 = vrot.lane.b32.xlu0 %v135, 49
    %v235 = vpop.permute.xlu0 %234
    %vm236 = vcmp.lt.s32.totalorder %v143, 49
    %v237 = vsel %vm236, %v233, %v235
    %v238 = vsel %vm236, %v235, %v233
    %239 = vrot.lane.b32.xlu0 %v151, 49
    %v240 = vpop.permute.xlu0 %239
    %241 = vrot.lane.b32.xlu0 %v152, 49
    %v242 = vpop.permute.xlu0 %241
    %v243 = vsel %vm236, %v240, %v242
    %v244 = vsel %vm236, %v242, %v240
    %s245 = scalar_lea.vmem [#allocation3], 8
    %v246 = vld [vmem:[%s245] sm:$0xf]
    %v249 = vcombine.low %v238, %v237
    %v251 = vunpack.c.l.s4 1983009808
    %v252 = vunpack.c.0.s8 %v251
    %v253 = vlaneseq
    %v254 = vshrl.u32 %v253, 7
    %v255 = vsub.s32 %v252, %v254
    %v256 = vrot.slane %v249, %v255
    %v258 = vmul.f32 %v246, %v256
    %v259 = vadd.f32 %v231, %v258
    %s260 = scalar_lea.vmem [#allocation6], 8
    %v261 = vld [vmem:[%s260] sm:$0xf]
    %v264 = vcombine.low %v244, %v243
    %v266 = vunpack.c.l.s4 1983009808
    %v267 = vunpack.c.0.s8 %v266
    %v268 = vlaneseq
    %v269 = vshrl.u32 %v268, 7
    %v270 = vsub.s32 %v267, %v269
    %v271 = vrot.slane %v264, %v270
    %v273 = vmul.f32 %v261, %v271
    %v274 = vadd.f32 %v259, %v273
    %275 = vrot.lane.b32.xlu0 %v134, 48
    %v276 = vpop.permute.xlu0 %275
    %277 = vrot.lane.b32.xlu0 %v135, 48
    %v278 = vpop.permute.xlu0 %277
    %vm279 = vcmp.lt.s32.totalorder %v143, 48
    %v280 = vsel %vm279, %v276, %v278
    %v281 = vsel %vm279, %v278, %v276
    %282 = vrot.lane.b32.xlu0 %v151, 48
    %v283 = vpop.permute.xlu0 %282
    %284 = vrot.lane.b32.xlu0 %v152, 48
    %v285 = vpop.permute.xlu0 %284
    %v286 = vsel %vm279, %v283, %v285
    %v287 = vsel %vm279, %v285, %v283
    %s288 = scalar_lea.vmem [#allocation3], 12
    %v289 = vld [vmem:[%s288] sm:$0xf]
    %v292 = vcombine.low %v281, %v280
    %v294 = vunpack.c.l.s4 1983009808
    %v295 = vunpack.c.0.s8 %v294
    %v296 = vlaneseq
    %v297 = vshrl.u32 %v296, 7
    %v298 = vsub.s32 %v295, %v297
    %v299 = vrot.slane %v292, %v298
    %v301 = vmul.f32 %v289, %v299
    %v302 = vadd.f32 %v274, %v301
    %s303 = scalar_lea.vmem [#allocation6], 12
    %v304 = vld [vmem:[%s303] sm:$0xf]
    %v307 = vcombine.low %v287, %v286
    %v309 = vunpack.c.l.s4 1983009808
    %v310 = vunpack.c.0.s8 %v309
    %v311 = vlaneseq
    %v312 = vshrl.u32 %v311, 7
    %v313 = vsub.s32 %v310, %v312
    %v314 = vrot.slane %v307, %v313
    %v316 = vmul.f32 %v304, %v314
    %v317 = vadd.f32 %v302, %v316
    %318 = vrot.lane.b32.xlu0 %v134, 47
    %v319 = vpop.permute.xlu0 %318
    %320 = vrot.lane.b32.xlu0 %v135, 47
    %v321 = vpop.permute.xlu0 %320
    %vm322 = vcmp.lt.s32.totalorder %v143, 47
    %v323 = vsel %vm322, %v319, %v321
    %v324 = vsel %vm322, %v321, %v319
    %325 = vrot.lane.b32.xlu0 %v151, 47
    %v326 = vpop.permute.xlu0 %325
    %327 = vrot.lane.b32.xlu0 %v152, 47
    %v328 = vpop.permute.xlu0 %327
    %v329 = vsel %vm322, %v326, %v328
    %v330 = vsel %vm322, %v328, %v326
    %s331 = scalar_lea.vmem [#allocation3], 16
    %v332 = vld [vmem:[%s331] sm:$0xf]
    %v335 = vcombine.low %v324, %v323
    %v337 = vunpack.c.l.s4 1983009808
    %v338 = vunpack.c.0.s8 %v337
    %v339 = vlaneseq
    %v340 = vshrl.u32 %v339, 7
    %v341 = vsub.s32 %v338, %v340
    %v342 = vrot.slane %v335, %v341
    %v344 = vmul.f32 %v332, %v342
    %v345 = vadd.f32 %v317, %v344
    %s346 = scalar_lea.vmem [#allocation6], 16
    %v347 = vld [vmem:[%s346] sm:$0xf]
    %v350 = vcombine.low %v330, %v329
    %v352 = vunpack.c.l.s4 1983009808
    %v353 = vunpack.c.0.s8 %v352
    %v354 = vlaneseq
    %v355 = vshrl.u32 %v354, 7
    %v356 = vsub.s32 %v353, %v355
    %v357 = vrot.slane %v350, %v356
    %v359 = vmul.f32 %v347, %v357
    %v360 = vadd.f32 %v345, %v359
    %361 = vrot.lane.b32.xlu0 %v134, 46
    %v362 = vpop.permute.xlu0 %361
    %363 = vrot.lane.b32.xlu0 %v135, 46
    %v364 = vpop.permute.xlu0 %363
    %vm365 = vcmp.lt.s32.totalorder %v143, 46
    %v366 = vsel %vm365, %v362, %v364
    %v367 = vsel %vm365, %v364, %v362
    %368 = vrot.lane.b32.xlu0 %v151, 46
    %v369 = vpop.permute.xlu0 %368
    %370 = vrot.lane.b32.xlu0 %v152, 46
    %v371 = vpop.permute.xlu0 %370
    %v372 = vsel %vm365, %v369, %v371
    %v373 = vsel %vm365, %v371, %v369
    %s374 = scalar_lea.vmem [#allocation3], 20
    %v375 = vld [vmem:[%s374] sm:$0xf]
    %v378 = vcombine.low %v367, %v366
    %v380 = vunpack.c.l.s4 1983009808
    %v381 = vunpack.c.0.s8 %v380
    %v382 = vlaneseq
    %v383 = vshrl.u32 %v382, 7
    %v384 = vsub.s32 %v381, %v383
    %v385 = vrot.slane %v378, %v384
    %v387 = vmul.f32 %v375, %v385
    %v388 = vadd.f32 %v360, %v387
    %s389 = scalar_lea.vmem [#allocation6], 20
    %v390 = vld [vmem:[%s389] sm:$0xf]
    %v393 = vcombine.low %v373, %v372
    %v395 = vunpack.c.l.s4 1983009808
    %v396 = vunpack.c.0.s8 %v395
    %v397 = vlaneseq
    %v398 = vshrl.u32 %v397, 7
    %v399 = vsub.s32 %v396, %v398
    %v400 = vrot.slane %v393, %v399
    %v402 = vmul.f32 %v390, %v400
    %v403 = vadd.f32 %v388, %v402
    %404 = vrot.lane.b32.xlu0 %v134, 45
    %v405 = vpop.permute.xlu0 %404
    %406 = vrot.lane.b32.xlu0 %v135, 45
    %v407 = vpop.permute.xlu0 %406
    %vm408 = vcmp.lt.s32.totalorder %v143, 45
    %v409 = vsel %vm408, %v405, %v407
    %v410 = vsel %vm408, %v407, %v405
    %411 = vrot.lane.b32.xlu0 %v151, 45
    %v412 = vpop.permute.xlu0 %411
    %413 = vrot.lane.b32.xlu0 %v152, 45
    %v414 = vpop.permute.xlu0 %413
    %v415 = vsel %vm408, %v412, %v414
    %v416 = vsel %vm408, %v414, %v412
    %s417 = scalar_lea.vmem [#allocation3], 24
    %v418 = vld [vmem:[%s417] sm:$0xf]
    %v421 = vcombine.low %v410, %v409
    %v423 = vunpack.c.l.s4 1983009808
    %v424 = vunpack.c.0.s8 %v423
    %v425 = vlaneseq
    %v426 = vshrl.u32 %v425, 7
    %v427 = vsub.s32 %v424, %v426
    %v428 = vrot.slane %v421, %v427
    %v430 = vmul.f32 %v418, %v428
    %v431 = vadd.f32 %v403, %v430
    %s432 = scalar_lea.vmem [#allocation6], 24
    %v433 = vld [vmem:[%s432] sm:$0xf]
    %v436 = vcombine.low %v416, %v415
    %v438 = vunpack.c.l.s4 1983009808
    %v439 = vunpack.c.0.s8 %v438
    %v440 = vlaneseq
    %v441 = vshrl.u32 %v440, 7
    %v442 = vsub.s32 %v439, %v441
    %v443 = vrot.slane %v436, %v442
    %v445 = vmul.f32 %v433, %v443
    %v446 = vadd.f32 %v431, %v445
    %447 = vrot.lane.b32.xlu0 %v134, 35
    %v448 = vpop.permute.xlu0 %447
    %449 = vrot.lane.b32.xlu0 %v135, 35
    %v450 = vpop.permute.xlu0 %449
    %vm451 = vcmp.lt.s32.totalorder %v143, 35
    %v452 = vsel %vm451, %v448, %v450
    %v453 = vsel %vm451, %v450, %v448
    %454 = vrot.lane.b32.xlu0 %v151, 35
    %v455 = vpop.permute.xlu0 %454
    %456 = vrot.lane.b32.xlu0 %v152, 35
    %v457 = vpop.permute.xlu0 %456
    %v458 = vsel %vm451, %v455, %v457
    %v459 = vsel %vm451, %v457, %v455
    %s460 = scalar_lea.vmem [#allocation3], 28
    %v461 = vld [vmem:[%s460] sm:$0xf]
    %v464 = vcombine.low %v453, %v452
    %v466 = vunpack.c.l.s4 1983009808
    %v467 = vunpack.c.0.s8 %v466
    %v468 = vlaneseq
    %v469 = vshrl.u32 %v468, 7
    %v470 = vsub.s32 %v467, %v469
    %v471 = vrot.slane %v464, %v470
    %v473 = vmul.f32 %v461, %v471
    %v474 = vadd.f32 %v446, %v473
    %s475 = scalar_lea.vmem [#allocation6], 28
    %v476 = vld [vmem:[%s475] sm:$0xf]
    %v479 = vcombine.low %v459, %v458
    %v481 = vunpack.c.l.s4 1983009808
    %v482 = vunpack.c.0.s8 %v481
    %v483 = vlaneseq
    %v484 = vshrl.u32 %v483, 7
    %v485 = vsub.s32 %v482, %v484
    %v486 = vrot.slane %v479, %v485
    %v488 = vmul.f32 %v476, %v486
    %v489 = vadd.f32 %v474, %v488
    %490 = vrot.lane.b32.xlu0 %v134, 34
    %v491 = vpop.permute.xlu0 %490
    %492 = vrot.lane.b32.xlu0 %v135, 34
    %v493 = vpop.permute.xlu0 %492
    %vm494 = vcmp.lt.s32.totalorder %v143, 34
    %v495 = vsel %vm494, %v491, %v493
    %v496 = vsel %vm494, %v493, %v491
    %497 = vrot.lane.b32.xlu0 %v151, 34
    %v498 = vpop.permute.xlu0 %497
    %499 = vrot.lane.b32.xlu0 %v152, 34
    %v500 = vpop.permute.xlu0 %499
    %v501 = vsel %vm494, %v498, %v500
    %v502 = vsel %vm494, %v500, %v498
    %s503 = scalar_lea.vmem [#allocation3], 32
    %v504 = vld [vmem:[%s503] sm:$0xf]
    %v507 = vcombine.low %v496, %v495
    %v509 = vunpack.c.l.s4 1983009808
    %v510 = vunpack.c.0.s8 %v509
    %v511 = vlaneseq
    %v512 = vshrl.u32 %v511, 7
    %v513 = vsub.s32 %v510, %v512
    %v514 = vrot.slane %v507, %v513
    %v516 = vmul.f32 %v504, %v514
    %v517 = vadd.f32 %v489, %v516
    %s518 = scalar_lea.vmem [#allocation6], 32
    %v519 = vld [vmem:[%s518] sm:$0xf]
    %v522 = vcombine.low %v502, %v501
    %v524 = vunpack.c.l.s4 1983009808
    %v525 = vunpack.c.0.s8 %v524
    %v526 = vlaneseq
    %v527 = vshrl.u32 %v526, 7
    %v528 = vsub.s32 %v525, %v527
    %v529 = vrot.slane %v522, %v528
    %v531 = vmul.f32 %v519, %v529
    %v532 = vadd.f32 %v517, %v531
    %533 = vrot.lane.b32.xlu0 %v134, 33
    %v534 = vpop.permute.xlu0 %533
    %535 = vrot.lane.b32.xlu0 %v135, 33
    %v536 = vpop.permute.xlu0 %535
    %vm537 = vcmp.lt.s32.totalorder %v143, 33
    %v538 = vsel %vm537, %v534, %v536
    %v539 = vsel %vm537, %v536, %v534
    %540 = vrot.lane.b32.xlu0 %v151, 33
    %v541 = vpop.permute.xlu0 %540
    %542 = vrot.lane.b32.xlu0 %v152, 33
    %v543 = vpop.permute.xlu0 %542
    %v544 = vsel %vm537, %v541, %v543
    %v545 = vsel %vm537, %v543, %v541
    %s546 = scalar_lea.vmem [#allocation3], 36
    %v547 = vld [vmem:[%s546] sm:$0xf]
    %v550 = vcombine.low %v539, %v538
    %v552 = vunpack.c.l.s4 1983009808
    %v553 = vunpack.c.0.s8 %v552
    %v554 = vlaneseq
    %v555 = vshrl.u32 %v554, 7
    %v556 = vsub.s32 %v553, %v555
    %v557 = vrot.slane %v550, %v556
    %v559 = vmul.f32 %v547, %v557
    %v560 = vadd.f32 %v532, %v559
    %s561 = scalar_lea.vmem [#allocation6], 36
    %v562 = vld [vmem:[%s561] sm:$0xf]
    %v565 = vcombine.low %v545, %v544
    %v567 = vunpack.c.l.s4 1983009808
    %v568 = vunpack.c.0.s8 %v567
    %v569 = vlaneseq
    %v570 = vshrl.u32 %v569, 7
    %v571 = vsub.s32 %v568, %v570
    %v572 = vrot.slane %v565, %v571
    %v574 = vmul.f32 %v562, %v572
    %v575 = vadd.f32 %v560, %v574
    %576 = vrot.lane.b32.xlu0 %v134, 32
    %v577 = vpop.permute.xlu0 %576
    %578 = vrot.lane.b32.xlu0 %v135, 32
    %v579 = vpop.permute.xlu0 %578
    %vm580 = vcmp.lt.s32.totalorder %v143, 32
    %v581 = vsel %vm580, %v577, %v579
    %v582 = vsel %vm580, %v579, %v577
    %583 = vrot.lane.b32.xlu0 %v151, 32
    %v584 = vpop.permute.xlu0 %583
    %585 = vrot.lane.b32.xlu0 %v152, 32
    %v586 = vpop.permute.xlu0 %585
    %v587 = vsel %vm580, %v584, %v586
    %v588 = vsel %vm580, %v586, %v584
    %s589 = scalar_lea.vmem [#allocation3], 40
    %v590 = vld [vmem:[%s589] sm:$0xf]
    %v593 = vcombine.low %v582, %v581
    %v595 = vunpack.c.l.s4 1983009808
    %v596 = vunpack.c.0.s8 %v595
    %v597 = vlaneseq
    %v598 = vshrl.u32 %v597, 7
    %v599 = vsub.s32 %v596, %v598
    %v600 = vrot.slane %v593, %v599
    %v602 = vmul.f32 %v590, %v600
    %v603 = vadd.f32 %v575, %v602
    %s604 = scalar_lea.vmem [#allocation6], 40
    %v605 = vld [vmem:[%s604] sm:$0xf]
    %v608 = vcombine.low %v588, %v587
    %v610 = vunpack.c.l.s4 1983009808
    %v611 = vunpack.c.0.s8 %v610
    %v612 = vlaneseq
    %v613 = vshrl.u32 %v612, 7
    %v614 = vsub.s32 %v611, %v613
    %v615 = vrot.slane %v608, %v614
    %v617 = vmul.f32 %v605, %v615
    %v618 = vadd.f32 %v603, %v617
    %619 = vrot.lane.b32.xlu0 %v134, 31
    %v620 = vpop.permute.xlu0 %619
    %621 = vrot.lane.b32.xlu0 %v135, 31
    %v622 = vpop.permute.xlu0 %621
    %vm623 = vcmp.lt.s32.totalorder %v143, 31
    %v624 = vsel %vm623, %v620, %v622
    %v625 = vsel %vm623, %v622, %v620
    %626 = vrot.lane.b32.xlu0 %v151, 31
    %v627 = vpop.permute.xlu0 %626
    %628 = vrot.lane.b32.xlu0 %v152, 31
    %v629 = vpop.permute.xlu0 %628
    %v630 = vsel %vm623, %v627, %v629
    %v631 = vsel %vm623, %v629, %v627
    %s632 = scalar_lea.vmem [#allocation3], 44
    %v633 = vld [vmem:[%s632] sm:$0xf]
    %v636 = vcombine.low %v625, %v624
    %v638 = vunpack.c.l.s4 1983009808
    %v639 = vunpack.c.0.s8 %v638
    %v640 = vlaneseq
    %v641 = vshrl.u32 %v640, 7
    %v642 = vsub.s32 %v639, %v641
    %v643 = vrot.slane %v636, %v642
    %v645 = vmul.f32 %v633, %v643
    %v646 = vadd.f32 %v618, %v645
    %s647 = scalar_lea.vmem [#allocation6], 44
    %v648 = vld [vmem:[%s647] sm:$0xf]
    %v651 = vcombine.low %v631, %v630
    %v653 = vunpack.c.l.s4 1983009808
    %v654 = vunpack.c.0.s8 %v653
    %v655 = vlaneseq
    %v656 = vshrl.u32 %v655, 7
    %v657 = vsub.s32 %v654, %v656
    %v658 = vrot.slane %v651, %v657
    %v660 = vmul.f32 %v648, %v658
    %v661 = vadd.f32 %v646, %v660
    %662 = vrot.lane.b32.xlu0 %v134, 30
    %v663 = vpop.permute.xlu0 %662
    %664 = vrot.lane.b32.xlu0 %v135, 30
    %v665 = vpop.permute.xlu0 %664
    %vm666 = vcmp.lt.s32.totalorder %v143, 30
    %v667 = vsel %vm666, %v663, %v665
    %v668 = vsel %vm666, %v665, %v663
    %669 = vrot.lane.b32.xlu0 %v151, 30
    %v670 = vpop.permute.xlu0 %669
    %671 = vrot.lane.b32.xlu0 %v152, 30
    %v672 = vpop.permute.xlu0 %671
    %v673 = vsel %vm666, %v670, %v672
    %v674 = vsel %vm666, %v672, %v670
    %s675 = scalar_lea.vmem [#allocation3], 48
    %v676 = vld [vmem:[%s675] sm:$0xf]
    %v679 = vcombine.low %v668, %v667
    %v681 = vunpack.c.l.s4 1983009808
    %v682 = vunpack.c.0.s8 %v681
    %v683 = vlaneseq
    %v684 = vshrl.u32 %v683, 7
    %v685 = vsub.s32 %v682, %v684
    %v686 = vrot.slane %v679, %v685
    %v688 = vmul.f32 %v676, %v686
    %v689 = vadd.f32 %v661, %v688
    %s690 = scalar_lea.vmem [#allocation6], 48
    %v691 = vld [vmem:[%s690] sm:$0xf]
    %v694 = vcombine.low %v674, %v673
    %v696 = vunpack.c.l.s4 1983009808
    %v697 = vunpack.c.0.s8 %v696
    %v698 = vlaneseq
    %v699 = vshrl.u32 %v698, 7
    %v700 = vsub.s32 %v697, %v699
    %v701 = vrot.slane %v694, %v700
    %v703 = vmul.f32 %v691, %v701
    %v704 = vadd.f32 %v689, %v703
    %705 = vrot.lane.b32.xlu0 %v134, 29
    %v706 = vpop.permute.xlu0 %705
    %707 = vrot.lane.b32.xlu0 %v135, 29
    %v708 = vpop.permute.xlu0 %707
    %vm709 = vcmp.lt.s32.totalorder %v143, 29
    %v710 = vsel %vm709, %v706, %v708
    %v711 = vsel %vm709, %v708, %v706
    %712 = vrot.lane.b32.xlu0 %v151, 29
    %v713 = vpop.permute.xlu0 %712
    %714 = vrot.lane.b32.xlu0 %v152, 29
    %v715 = vpop.permute.xlu0 %714
    %v716 = vsel %vm709, %v713, %v715
    %v717 = vsel %vm709, %v715, %v713
    %s718 = scalar_lea.vmem [#allocation3], 52
    %v719 = vld [vmem:[%s718] sm:$0xf]
    %v722 = vcombine.low %v711, %v710
    %v724 = vunpack.c.l.s4 1983009808
    %v725 = vunpack.c.0.s8 %v724
    %v726 = vlaneseq
    %v727 = vshrl.u32 %v726, 7
    %v728 = vsub.s32 %v725, %v727
    %v729 = vrot.slane %v722, %v728
    %v731 = vmul.f32 %v719, %v729
    %v732 = vadd.f32 %v704, %v731
    %s733 = scalar_lea.vmem [#allocation6], 52
    %v734 = vld [vmem:[%s733] sm:$0xf]
    %v737 = vcombine.low %v717, %v716
    %v739 = vunpack.c.l.s4 1983009808
    %v740 = vunpack.c.0.s8 %v739
    %v741 = vlaneseq
    %v742 = vshrl.u32 %v741, 7
    %v743 = vsub.s32 %v740, %v742
    %v744 = vrot.slane %v737, %v743
    %v746 = vmul.f32 %v734, %v744
    %v747 = vadd.f32 %v732, %v746
    %748 = vrot.lane.b32.xlu0 %v134, 19
    %v749 = vpop.permute.xlu0 %748
    %750 = vrot.lane.b32.xlu0 %v135, 19
    %v751 = vpop.permute.xlu0 %750
    %vm752 = vcmp.lt.s32.totalorder %v143, 19
    %v753 = vsel %vm752, %v749, %v751
    %v754 = vsel %vm752, %v751, %v749
    %755 = vrot.lane.b32.xlu0 %v151, 19
    %v756 = vpop.permute.xlu0 %755
    %757 = vrot.lane.b32.xlu0 %v152, 19
    %v758 = vpop.permute.xlu0 %757
    %v759 = vsel %vm752, %v756, %v758
    %v760 = vsel %vm752, %v758, %v756
    %s761 = scalar_lea.vmem [#allocation3], 56
    %v762 = vld [vmem:[%s761] sm:$0xf]
    %v765 = vcombine.low %v754, %v753
    %v767 = vunpack.c.l.s4 1983009808
    %v768 = vunpack.c.0.s8 %v767
    %v769 = vlaneseq
    %v770 = vshrl.u32 %v769, 7
    %v771 = vsub.s32 %v768, %v770
    %v772 = vrot.slane %v765, %v771
    %v774 = vmul.f32 %v762, %v772
    %v775 = vadd.f32 %v747, %v774
    %s776 = scalar_lea.vmem [#allocation6], 56
    %v777 = vld [vmem:[%s776] sm:$0xf]
    %v780 = vcombine.low %v760, %v759
    %v782 = vunpack.c.l.s4 1983009808
    %v783 = vunpack.c.0.s8 %v782
    %v784 = vlaneseq
    %v785 = vshrl.u32 %v784, 7
    %v786 = vsub.s32 %v783, %v785
    %v787 = vrot.slane %v780, %v786
    %v789 = vmul.f32 %v777, %v787
    %v790 = vadd.f32 %v775, %v789
    %791 = vrot.lane.b32.xlu0 %v134, 18
    %v792 = vpop.permute.xlu0 %791
    %793 = vrot.lane.b32.xlu0 %v135, 18
    %v794 = vpop.permute.xlu0 %793
    %vm795 = vcmp.lt.s32.totalorder %v143, 18
    %v796 = vsel %vm795, %v792, %v794
    %v797 = vsel %vm795, %v794, %v792
    %798 = vrot.lane.b32.xlu0 %v151, 18
    %v799 = vpop.permute.xlu0 %798
    %800 = vrot.lane.b32.xlu0 %v152, 18
    %v801 = vpop.permute.xlu0 %800
    %v802 = vsel %vm795, %v799, %v801
    %v803 = vsel %vm795, %v801, %v799
    %s804 = scalar_lea.vmem [#allocation3], 60
    %v805 = vld [vmem:[%s804] sm:$0xf]
    %v808 = vcombine.low %v797, %v796
    %v810 = vunpack.c.l.s4 1983009808
    %v811 = vunpack.c.0.s8 %v810
    %v812 = vlaneseq
    %v813 = vshrl.u32 %v812, 7
    %v814 = vsub.s32 %v811, %v813
    %v815 = vrot.slane %v808, %v814
    %v817 = vmul.f32 %v805, %v815
    %v818 = vadd.f32 %v790, %v817
    %s819 = scalar_lea.vmem [#allocation6], 60
    %v820 = vld [vmem:[%s819] sm:$0xf]
    %v823 = vcombine.low %v803, %v802
    %v825 = vunpack.c.l.s4 1983009808
    %v826 = vunpack.c.0.s8 %v825
    %v827 = vlaneseq
    %v828 = vshrl.u32 %v827, 7
    %v829 = vsub.s32 %v826, %v828
    %v830 = vrot.slane %v823, %v829
    %v832 = vmul.f32 %v820, %v830
    %v833 = vadd.f32 %v818, %v832
    %834 = vrot.lane.b32.xlu0 %v134, 17
    %v835 = vpop.permute.xlu0 %834
    %836 = vrot.lane.b32.xlu0 %v135, 17
    %v837 = vpop.permute.xlu0 %836
    %vm838 = vcmp.lt.s32.totalorder %v143, 17
    %v839 = vsel %vm838, %v835, %v837
    %v840 = vsel %vm838, %v837, %v835
    %841 = vrot.lane.b32.xlu0 %v151, 17
    %v842 = vpop.permute.xlu0 %841
    %843 = vrot.lane.b32.xlu0 %v152, 17
    %v844 = vpop.permute.xlu0 %843
    %v845 = vsel %vm838, %v842, %v844
    %v846 = vsel %vm838, %v844, %v842
    %s847 = scalar_lea.vmem [#allocation3], 64
    %v848 = vld [vmem:[%s847] sm:$0xf]
    %v851 = vcombine.low %v840, %v839
    %v853 = vunpack.c.l.s4 1983009808
    %v854 = vunpack.c.0.s8 %v853
    %v855 = vlaneseq
    %v856 = vshrl.u32 %v855, 7
    %v857 = vsub.s32 %v854, %v856
    %v858 = vrot.slane %v851, %v857
    %v860 = vmul.f32 %v848, %v858
    %v861 = vadd.f32 %v833, %v860
    %s862 = scalar_lea.vmem [#allocation6], 64
    %v863 = vld [vmem:[%s862] sm:$0xf]
    %v866 = vcombine.low %v846, %v845
    %v868 = vunpack.c.l.s4 1983009808
    %v869 = vunpack.c.0.s8 %v868
    %v870 = vlaneseq
    %v871 = vshrl.u32 %v870, 7
    %v872 = vsub.s32 %v869, %v871
    %v873 = vrot.slane %v866, %v872
    %v875 = vmul.f32 %v863, %v873
    %v876 = vadd.f32 %v861, %v875
    %877 = vrot.lane.b32.xlu0 %v134, 16
    %v878 = vpop.permute.xlu0 %877
    %879 = vrot.lane.b32.xlu0 %v135, 16
    %v880 = vpop.permute.xlu0 %879
    %vm881 = vcmp.lt.s32.totalorder %v143, 16
    %v882 = vsel %vm881, %v878, %v880
    %v883 = vsel %vm881, %v880, %v878
    %884 = vrot.lane.b32.xlu0 %v151, 16
    %v885 = vpop.permute.xlu0 %884
    %886 = vrot.lane.b32.xlu0 %v152, 16
    %v887 = vpop.permute.xlu0 %886
    %v888 = vsel %vm881, %v885, %v887
    %v889 = vsel %vm881, %v887, %v885
    %s890 = scalar_lea.vmem [#allocation3], 68
    %v891 = vld [vmem:[%s890] sm:$0xf]
    %v894 = vcombine.low %v883, %v882
    %v896 = vunpack.c.l.s4 1983009808
    %v897 = vunpack.c.0.s8 %v896
    %v898 = vlaneseq
    %v899 = vshrl.u32 %v898, 7
    %v900 = vsub.s32 %v897, %v899
    %v901 = vrot.slane %v894, %v900
    %v903 = vmul.f32 %v891, %v901
    %v904 = vadd.f32 %v876, %v903
    %s905 = scalar_lea.vmem [#allocation6], 68
    %v906 = vld [vmem:[%s905] sm:$0xf]
    %v909 = vcombine.low %v889, %v888
    %v911 = vunpack.c.l.s4 1983009808
    %v912 = vunpack.c.0.s8 %v911
    %v913 = vlaneseq
    %v914 = vshrl.u32 %v913, 7
    %v915 = vsub.s32 %v912, %v914
    %v916 = vrot.slane %v909, %v915
    %v918 = vmul.f32 %v906, %v916
    %v919 = vadd.f32 %v904, %v918
    %920 = vrot.lane.b32.xlu0 %v134, 15
    %v921 = vpop.permute.xlu0 %920
    %922 = vrot.lane.b32.xlu0 %v135, 15
    %v923 = vpop.permute.xlu0 %922
    %vm924 = vcmp.lt.s32.totalorder %v143, 15
    %v925 = vsel %vm924, %v921, %v923
    %v926 = vsel %vm924, %v923, %v921
    %927 = vrot.lane.b32.xlu0 %v151, 15
    %v928 = vpop.permute.xlu0 %927
    %929 = vrot.lane.b32.xlu0 %v152, 15
    %v930 = vpop.permute.xlu0 %929
    %v931 = vsel %vm924, %v928, %v930
    %v932 = vsel %vm924, %v930, %v928
    %s933 = scalar_lea.vmem [#allocation3], 72
    %v934 = vld [vmem:[%s933] sm:$0xf]
    %v937 = vcombine.low %v926, %v925
    %v939 = vunpack.c.l.s4 1983009808
    %v940 = vunpack.c.0.s8 %v939
    %v941 = vlaneseq
    %v942 = vshrl.u32 %v941, 7
    %v943 = vsub.s32 %v940, %v942
    %v944 = vrot.slane %v937, %v943
    %v946 = vmul.f32 %v934, %v944
    %v947 = vadd.f32 %v919, %v946
    %s948 = scalar_lea.vmem [#allocation6], 72
    %v949 = vld [vmem:[%s948] sm:$0xf]
    %v952 = vcombine.low %v932, %v931
    %v954 = vunpack.c.l.s4 1983009808
    %v955 = vunpack.c.0.s8 %v954
    %v956 = vlaneseq
    %v957 = vshrl.u32 %v956, 7
    %v958 = vsub.s32 %v955, %v957
    %v959 = vrot.slane %v952, %v958
    %v961 = vmul.f32 %v949, %v959
    %v962 = vadd.f32 %v947, %v961
    %963 = vrot.lane.b32.xlu0 %v134, 14
    %v964 = vpop.permute.xlu0 %963
    %965 = vrot.lane.b32.xlu0 %v135, 14
    %v966 = vpop.permute.xlu0 %965
    %vm967 = vcmp.lt.s32.totalorder %v143, 14
    %v968 = vsel %vm967, %v964, %v966
    %v969 = vsel %vm967, %v966, %v964
    %970 = vrot.lane.b32.xlu0 %v151, 14
    %v971 = vpop.permute.xlu0 %970
    %972 = vrot.lane.b32.xlu0 %v152, 14
    %v973 = vpop.permute.xlu0 %972
    %v974 = vsel %vm967, %v971, %v973
    %v975 = vsel %vm967, %v973, %v971
    %s976 = scalar_lea.vmem [#allocation3], 76
    %v977 = vld [vmem:[%s976] sm:$0xf]
    %v980 = vcombine.low %v969, %v968
    %v982 = vunpack.c.l.s4 1983009808
    %v983 = vunpack.c.0.s8 %v982
    %v984 = vlaneseq
    %v985 = vshrl.u32 %v984, 7
    %v986 = vsub.s32 %v983, %v985
    %v987 = vrot.slane %v980, %v986
    %v989 = vmul.f32 %v977, %v987
    %v990 = vadd.f32 %v962, %v989
    %s991 = scalar_lea.vmem [#allocation6], 76
    %v992 = vld [vmem:[%s991] sm:$0xf]
    %v995 = vcombine.low %v975, %v974
    %v997 = vunpack.c.l.s4 1983009808
    %v998 = vunpack.c.0.s8 %v997
    %v999 = vlaneseq
    %v1000 = vshrl.u32 %v999, 7
    %v1001 = vsub.s32 %v998, %v1000
    %v1002 = vrot.slane %v995, %v1001
    %v1004 = vmul.f32 %v992, %v1002
    %v1005 = vadd.f32 %v990, %v1004
    %1006 = vrot.lane.b32.xlu0 %v134, 13
    %v1007 = vpop.permute.xlu0 %1006
    %1008 = vrot.lane.b32.xlu0 %v135, 13
    %v1009 = vpop.permute.xlu0 %1008
    %vm1010 = vcmp.lt.s32.totalorder %v143, 13
    %v1011 = vsel %vm1010, %v1007, %v1009
    %v1012 = vsel %vm1010, %v1009, %v1007
    %1013 = vrot.lane.b32.xlu0 %v151, 13
    %v1014 = vpop.permute.xlu0 %1013
    %1015 = vrot.lane.b32.xlu0 %v152, 13
    %v1016 = vpop.permute.xlu0 %1015
    %v1017 = vsel %vm1010, %v1014, %v1016
    %v1018 = vsel %vm1010, %v1016, %v1014
    %s1019 = scalar_lea.vmem [#allocation3], 80
    %v1020 = vld [vmem:[%s1019] sm:$0xf]
    %v1023 = vcombine.low %v1012, %v1011
    %v1025 = vunpack.c.l.s4 1983009808
    %v1026 = vunpack.c.0.s8 %v1025
    %v1027 = vlaneseq
    %v1028 = vshrl.u32 %v1027, 7
    %v1029 = vsub.s32 %v1026, %v1028
    %v1030 = vrot.slane %v1023, %v1029
    %v1032 = vmul.f32 %v1020, %v1030
    %v1033 = vadd.f32 %v1005, %v1032
    %s1034 = scalar_lea.vmem [#allocation6], 80
    %v1035 = vld [vmem:[%s1034] sm:$0xf]
    %v1038 = vcombine.low %v1018, %v1017
    %v1040 = vunpack.c.l.s4 1983009808
    %v1041 = vunpack.c.0.s8 %v1040
    %v1042 = vlaneseq
    %v1043 = vshrl.u32 %v1042, 7
    %v1044 = vsub.s32 %v1041, %v1043
    %v1045 = vrot.slane %v1038, %v1044
    %v1047 = vmul.f32 %v1035, %v1045
    %v1048 = vadd.f32 %v1033, %v1047
    %1049 = vrot.lane.b32.xlu0 %v134, 3
    %v1050 = vpop.permute.xlu0 %1049
    %1051 = vrot.lane.b32.xlu0 %v135, 3
    %v1052 = vpop.permute.xlu0 %1051
    %vm1053 = vcmp.lt.s32.totalorder %v143, 3
    %v1054 = vsel %vm1053, %v1050, %v1052
    %v1055 = vsel %vm1053, %v1052, %v1050
    %1056 = vrot.lane.b32.xlu0 %v151, 3
    %v1057 = vpop.permute.xlu0 %1056
    %1058 = vrot.lane.b32.xlu0 %v152, 3
    %v1059 = vpop.permute.xlu0 %1058
    %v1060 = vsel %vm1053, %v1057, %v1059
    %v1061 = vsel %vm1053, %v1059, %v1057
    %s1062 = scalar_lea.vmem [#allocation3], 84
    %v1063 = vld [vmem:[%s1062] sm:$0xf]
    %v1066 = vcombine.low %v1055, %v1054
    %v1068 = vunpack.c.l.s4 1983009808
    %v1069 = vunpack.c.0.s8 %v1068
    %v1070 = vlaneseq
    %v1071 = vshrl.u32 %v1070, 7
    %v1072 = vsub.s32 %v1069, %v1071
    %v1073 = vrot.slane %v1066, %v1072
    %v1075 = vmul.f32 %v1063, %v1073
    %v1076 = vadd.f32 %v1048, %v1075
    %s1077 = scalar_lea.vmem [#allocation6], 84
    %v1078 = vld [vmem:[%s1077] sm:$0xf]
    %v1081 = vcombine.low %v1061, %v1060
    %v1083 = vunpack.c.l.s4 1983009808
    %v1084 = vunpack.c.0.s8 %v1083
    %v1085 = vlaneseq
    %v1086 = vshrl.u32 %v1085, 7
    %v1087 = vsub.s32 %v1084, %v1086
    %v1088 = vrot.slane %v1081, %v1087
    %v1090 = vmul.f32 %v1078, %v1088
    %v1091 = vadd.f32 %v1076, %v1090
    %1092 = vrot.lane.b32.xlu0 %v134, 2
    %v1093 = vpop.permute.xlu0 %1092
    %1094 = vrot.lane.b32.xlu0 %v135, 2
    %v1095 = vpop.permute.xlu0 %1094
    %vm1096 = vcmp.lt.s32.totalorder %v143, 2
    %v1097 = vsel %vm1096, %v1093, %v1095
    %v1098 = vsel %vm1096, %v1095, %v1093
    %1099 = vrot.lane.b32.xlu0 %v151, 2
    %v1100 = vpop.permute.xlu0 %1099
    %1101 = vrot.lane.b32.xlu0 %v152, 2
    %v1102 = vpop.permute.xlu0 %1101
    %v1103 = vsel %vm1096, %v1100, %v1102
    %v1104 = vsel %vm1096, %v1102, %v1100
    %s1105 = scalar_lea.vmem [#allocation3], 88
    %v1106 = vld [vmem:[%s1105] sm:$0xf]
    %v1109 = vcombine.low %v1098, %v1097
    %v1111 = vunpack.c.l.s4 1983009808
    %v1112 = vunpack.c.0.s8 %v1111
    %v1113 = vlaneseq
    %v1114 = vshrl.u32 %v1113, 7
    %v1115 = vsub.s32 %v1112, %v1114
    %v1116 = vrot.slane %v1109, %v1115
    %v1118 = vmul.f32 %v1106, %v1116
    %v1119 = vadd.f32 %v1091, %v1118
    %s1120 = scalar_lea.vmem [#allocation6], 88
    %v1121 = vld [vmem:[%s1120] sm:$0xf]
    %v1124 = vcombine.low %v1104, %v1103
    %v1126 = vunpack.c.l.s4 1983009808
    %v1127 = vunpack.c.0.s8 %v1126
    %v1128 = vlaneseq
    %v1129 = vshrl.u32 %v1128, 7
    %v1130 = vsub.s32 %v1127, %v1129
    %v1131 = vrot.slane %v1124, %v1130
    %v1133 = vmul.f32 %v1121, %v1131
    %v1134 = vadd.f32 %v1119, %v1133
    %1135 = vrot.lane.b32.xlu0 %v134, 1
    %v1136 = vpop.permute.xlu0 %1135
    %1137 = vrot.lane.b32.xlu0 %v135, 1
    %v1138 = vpop.permute.xlu0 %1137
    %vm1139 = vcmp.lt.s32.totalorder %v143, 1
    %v1140 = vsel %vm1139, %v1136, %v1138
    %v1141 = vsel %vm1139, %v1138, %v1136
    %1142 = vrot.lane.b32.xlu0 %v151, 1
    %v1143 = vpop.permute.xlu0 %1142
    %1144 = vrot.lane.b32.xlu0 %v152, 1
    %v1145 = vpop.permute.xlu0 %1144
    %v1146 = vsel %vm1139, %v1143, %v1145
    %v1147 = vsel %vm1139, %v1145, %v1143
    %s1148 = scalar_lea.vmem [#allocation3], 92
    %v1149 = vld [vmem:[%s1148] sm:$0xf]
    %v1152 = vcombine.low %v1141, %v1140
    %v1154 = vunpack.c.l.s4 1983009808
    %v1155 = vunpack.c.0.s8 %v1154
    %v1156 = vlaneseq
    %v1157 = vshrl.u32 %v1156, 7
    %v1158 = vsub.s32 %v1155, %v1157
    %v1159 = vrot.slane %v1152, %v1158
    %v1161 = vmul.f32 %v1149, %v1159
    %v1162 = vadd.f32 %v1134, %v1161
    %s1163 = scalar_lea.vmem [#allocation6], 92
    %v1164 = vld [vmem:[%s1163] sm:$0xf]
    %v1167 = vcombine.low %v1147, %v1146
    %v1169 = vunpack.c.l.s4 1983009808
    %v1170 = vunpack.c.0.s8 %v1169
    %v1171 = vlaneseq
    %v1172 = vshrl.u32 %v1171, 7
    %v1173 = vsub.s32 %v1170, %v1172
    %v1174 = vrot.slane %v1167, %v1173
    %v1176 = vmul.f32 %v1164, %v1174
    %v1177 = vadd.f32 %v1162, %v1176
    %s1178 = scalar_lea.vmem [#allocation3], 96
    %v1179 = vld [vmem:[%s1178] sm:$0xf]
    %v1180 = vcombine.low %v75, %v82
    %v1182 = vunpack.c.l.s4 1983009808
    %v1183 = vunpack.c.0.s8 %v1182
    %v1184 = vlaneseq
    %v1185 = vshrl.u32 %v1184, 7
    %v1186 = vsub.s32 %v1183, %v1185
    %v1187 = vrot.slane %v1180, %v1186
    %v1188 = vcombine.low %v89, %v96
    %v1190 = vunpack.c.l.s4 1983009808
    %v1191 = vunpack.c.0.s8 %v1190
    %v1192 = vlaneseq
    %v1193 = vshrl.u32 %v1192, 7
    %v1194 = vsub.s32 %v1191, %v1193
    %v1195 = vrot.slane %v1188, %v1194
    %vm1196 = vcmask 1044484
    %v1197 = vsel %vm1196, %v1187, %v1187
    %vm1198 = vcmask 1046534
    %v1199 = vsel %vm1198, %v1187, %v1197
    %v1200 = vrot.slane %v1195, 7
    %v1201 = vsel %vm133, %v1200, %v1199
    %vm1202 = vcmask 1043459
    %v1203 = vsel %vm1202, %v1200, %v1201
    %vm1204 = vcmask 1045509
    %v1205 = vsel %vm1204, %v1200, %v1203
    %vm1206 = vcmask 1047559
    %v1207 = vsel %vm1206, %v1200, %v1205
    %v1209 = vmul.f32 %v1179, %v1207
    %v1210 = vadd.f32 %v1177, %v1209
    %s1211 = scalar_lea.vmem [#allocation6], 96
    %v1212 = vld [vmem:[%s1211] sm:$0xf]
    %v1213 = vcombine.low %v125, %v126
    %v1215 = vunpack.c.l.s4 1983009808
    %v1216 = vunpack.c.0.s8 %v1215
    %v1217 = vlaneseq
    %v1218 = vshrl.u32 %v1217, 7
    %v1219 = vsub.s32 %v1216, %v1218
    %v1220 = vrot.slane %v1213, %v1219
    %v1221 = vcombine.low %v127, %v128
    %v1223 = vunpack.c.l.s4 1983009808
    %v1224 = vunpack.c.0.s8 %v1223
    %v1225 = vlaneseq
    %v1226 = vshrl.u32 %v1225, 7
    %v1227 = vsub.s32 %v1224, %v1226
    %v1228 = vrot.slane %v1221, %v1227
    %v1229 = vsel %vm1196, %v1220, %v1220
    %v1230 = vsel %vm1198, %v1220, %v1229
    %v1231 = vrot.slane %v1228, 7
    %v1232 = vsel %vm133, %v1231, %v1230
    %v1233 = vsel %vm1202, %v1231, %v1232
    %v1234 = vsel %vm1204, %v1231, %v1233
    %v1235 = vsel %vm1206, %v1231, %v1234
    %v1237 = vmul.f32 %v1212, %v1235
    %v1238 = vadd.f32 %v1210, %v1237
    %1239 = vrot.lane.b32.xlu0 %v134, 127
    %v1240 = vpop.permute.xlu0 %1239
    %1241 = vrot.lane.b32.xlu0 %v135, 127
    %v1242 = vpop.permute.xlu0 %1241
    %vm1243 = vcmp.lt.s32.totalorder %v143, 127
    %v1244 = vsel %vm1243, %v1240, %v1242
    %v1245 = vsel %vm1243, %v1242, %v1240
    %1246 = vrot.lane.b32.xlu0 %v151, 127
    %v1247 = vpop.permute.xlu0 %1246
    %1248 = vrot.lane.b32.xlu0 %v152, 127
    %v1249 = vpop.permute.xlu0 %1248
    %v1250 = vsel %vm1243, %v1247, %v1249
    %v1251 = vsel %vm1243, %v1249, %v1247
    %s1252 = scalar_lea.vmem [#allocation3], 100
    %v1253 = vld [vmem:[%s1252] sm:$0xf]
    %v1256 = vcombine.low %v1244, %v1245
    %v1258 = vunpack.c.l.s4 1983009808
    %v1259 = vunpack.c.0.s8 %v1258
    %v1260 = vlaneseq
    %v1261 = vshrl.u32 %v1260, 7
    %v1262 = vsub.s32 %v1259, %v1261
    %v1263 = vrot.slane %v1256, %v1262
    %v1265 = vmul.f32 %v1253, %v1263
    %v1266 = vadd.f32 %v1238, %v1265
    %s1267 = scalar_lea.vmem [#allocation6], 100
    %v1268 = vld [vmem:[%s1267] sm:$0xf]
    %v1271 = vcombine.low %v1250, %v1251
    %v1273 = vunpack.c.l.s4 1983009808
    %v1274 = vunpack.c.0.s8 %v1273
    %v1275 = vlaneseq
    %v1276 = vshrl.u32 %v1275, 7
    %v1277 = vsub.s32 %v1274, %v1276
    %v1278 = vrot.slane %v1271, %v1277
    %v1280 = vmul.f32 %v1268, %v1278
    %v1281 = vadd.f32 %v1266, %v1280
    %1282 = vrot.lane.b32.xlu0 %v134, 126
    %v1283 = vpop.permute.xlu0 %1282
    %1284 = vrot.lane.b32.xlu0 %v135, 126
    %v1285 = vpop.permute.xlu0 %1284
    %vm1286 = vcmp.lt.s32.totalorder %v143, 126
    %v1287 = vsel %vm1286, %v1283, %v1285
    %v1288 = vsel %vm1286, %v1285, %v1283
    %1289 = vrot.lane.b32.xlu0 %v151, 126
    %v1290 = vpop.permute.xlu0 %1289
    %1291 = vrot.lane.b32.xlu0 %v152, 126
    %v1292 = vpop.permute.xlu0 %1291
    %v1293 = vsel %vm1286, %v1290, %v1292
    %v1294 = vsel %vm1286, %v1292, %v1290
    %s1295 = scalar_lea.vmem [#allocation3], 104
    %v1296 = vld [vmem:[%s1295] sm:$0xf]
    %v1299 = vcombine.low %v1287, %v1288
    %v1301 = vunpack.c.l.s4 1983009808
    %v1302 = vunpack.c.0.s8 %v1301
    %v1303 = vlaneseq
    %v1304 = vshrl.u32 %v1303, 7
    %v1305 = vsub.s32 %v1302, %v1304
    %v1306 = vrot.slane %v1299, %v1305
    %v1308 = vmul.f32 %v1296, %v1306
    %v1309 = vadd.f32 %v1281, %v1308
    %s1310 = scalar_lea.vmem [#allocation6], 104
    %v1311 = vld [vmem:[%s1310] sm:$0xf]
    %v1314 = vcombine.low %v1293, %v1294
    %v1316 = vunpack.c.l.s4 1983009808
    %v1317 = vunpack.c.0.s8 %v1316
    %v1318 = vlaneseq
    %v1319 = vshrl.u32 %v1318, 7
    %v1320 = vsub.s32 %v1317, %v1319
    %v1321 = vrot.slane %v1314, %v1320
    %v1323 = vmul.f32 %v1311, %v1321
    %v1324 = vadd.f32 %v1309, %v1323
    %1325 = vrot.lane.b32.xlu0 %v134, 125
    %v1326 = vpop.permute.xlu0 %1325
    %1327 = vrot.lane.b32.xlu0 %v135, 125
    %v1328 = vpop.permute.xlu0 %1327
    %vm1329 = vcmp.lt.s32.totalorder %v143, 125
    %v1330 = vsel %vm1329, %v1326, %v1328
    %v1331 = vsel %vm1329, %v1328, %v1326
    %1332 = vrot.lane.b32.xlu0 %v151, 125
    %v1333 = vpop.permute.xlu0 %1332
    %1334 = vrot.lane.b32.xlu0 %v152, 125
    %v1335 = vpop.permute.xlu0 %1334
    %v1336 = vsel %vm1329, %v1333, %v1335
    %v1337 = vsel %vm1329, %v1335, %v1333
    %s1338 = scalar_lea.vmem [#allocation3], 108
    %v1339 = vld [vmem:[%s1338] sm:$0xf]
    %v1342 = vcombine.low %v1330, %v1331
    %v1344 = vunpack.c.l.s4 1983009808
    %v1345 = vunpack.c.0.s8 %v1344
    %v1346 = vlaneseq
    %v1347 = vshrl.u32 %v1346, 7
    %v1348 = vsub.s32 %v1345, %v1347
    %v1349 = vrot.slane %v1342, %v1348
    %v1351 = vmul.f32 %v1339, %v1349
    %v1352 = vadd.f32 %v1324, %v1351
    %s1353 = scalar_lea.vmem [#allocation6], 108
    %v1354 = vld [vmem:[%s1353] sm:$0xf]
    %v1357 = vcombine.low %v1336, %v1337
    %v1359 = vunpack.c.l.s4 1983009808
    %v1360 = vunpack.c.0.s8 %v1359
    %v1361 = vlaneseq
    %v1362 = vshrl.u32 %v1361, 7
    %v1363 = vsub.s32 %v1360, %v1362
    %v1364 = vrot.slane %v1357, %v1363
    %v1366 = vmul.f32 %v1354, %v1364
    %v1367 = vadd.f32 %v1352, %v1366
    %1368 = vrot.lane.b32.xlu0 %v134, 115
    %v1369 = vpop.permute.xlu0 %1368
    %1370 = vrot.lane.b32.xlu0 %v135, 115
    %v1371 = vpop.permute.xlu0 %1370
    %vm1372 = vcmp.lt.s32.totalorder %v143, 115
    %v1373 = vsel %vm1372, %v1369, %v1371
    %v1374 = vsel %vm1372, %v1371, %v1369
    %1375 = vrot.lane.b32.xlu0 %v151, 115
    %v1376 = vpop.permute.xlu0 %1375
    %1377 = vrot.lane.b32.xlu0 %v152, 115
    %v1378 = vpop.permute.xlu0 %1377
    %v1379 = vsel %vm1372, %v1376, %v1378
    %v1380 = vsel %vm1372, %v1378, %v1376
    %s1381 = scalar_lea.vmem [#allocation3], 112
    %v1382 = vld [vmem:[%s1381] sm:$0xf]
    %v1385 = vcombine.low %v1373, %v1374
    %v1387 = vunpack.c.l.s4 1983009808
    %v1388 = vunpack.c.0.s8 %v1387
    %v1389 = vlaneseq
    %v1390 = vshrl.u32 %v1389, 7
    %v1391 = vsub.s32 %v1388, %v1390
    %v1392 = vrot.slane %v1385, %v1391
    %v1394 = vmul.f32 %v1382, %v1392
    %v1395 = vadd.f32 %v1367, %v1394
    %s1396 = scalar_lea.vmem [#allocation6], 112
    %v1397 = vld [vmem:[%s1396] sm:$0xf]
    %v1400 = vcombine.low %v1379, %v1380
    %v1402 = vunpack.c.l.s4 1983009808
    %v1403 = vunpack.c.0.s8 %v1402
    %v1404 = vlaneseq
    %v1405 = vshrl.u32 %v1404, 7
    %v1406 = vsub.s32 %v1403, %v1405
    %v1407 = vrot.slane %v1400, %v1406
    %v1409 = vmul.f32 %v1397, %v1407
    %v1410 = vadd.f32 %v1395, %v1409
    %1411 = vrot.lane.b32.xlu0 %v134, 114
    %v1412 = vpop.permute.xlu0 %1411
    %1413 = vrot.lane.b32.xlu0 %v135, 114
    %v1414 = vpop.permute.xlu0 %1413
    %vm1415 = vcmp.lt.s32.totalorder %v143, 114
    %v1416 = vsel %vm1415, %v1412, %v1414
    %v1417 = vsel %vm1415, %v1414, %v1412
    %1418 = vrot.lane.b32.xlu0 %v151, 114
    %v1419 = vpop.permute.xlu0 %1418
    %1420 = vrot.lane.b32.xlu0 %v152, 114
    %v1421 = vpop.permute.xlu0 %1420
    %v1422 = vsel %vm1415, %v1419, %v1421
    %v1423 = vsel %vm1415, %v1421, %v1419
    %s1424 = scalar_lea.vmem [#allocation3], 116
    %v1425 = vld [vmem:[%s1424] sm:$0xf]
    %v1428 = vcombine.low %v1416, %v1417
    %v1430 = vunpack.c.l.s4 1983009808
    %v1431 = vunpack.c.0.s8 %v1430
    %v1432 = vlaneseq
    %v1433 = vshrl.u32 %v1432, 7
    %v1434 = vsub.s32 %v1431, %v1433
    %v1435 = vrot.slane %v1428, %v1434
    %v1437 = vmul.f32 %v1425, %v1435
    %v1438 = vadd.f32 %v1410, %v1437
    %s1439 = scalar_lea.vmem [#allocation6], 116
    %v1440 = vld [vmem:[%s1439] sm:$0xf]
    %v1443 = vcombine.low %v1422, %v1423
    %v1445 = vunpack.c.l.s4 1983009808
    %v1446 = vunpack.c.0.s8 %v1445
    %v1447 = vlaneseq
    %v1448 = vshrl.u32 %v1447, 7
    %v1449 = vsub.s32 %v1446, %v1448
    %v1450 = vrot.slane %v1443, %v1449
    %v1452 = vmul.f32 %v1440, %v1450
    %v1453 = vadd.f32 %v1438, %v1452
    %1454 = vrot.lane.b32.xlu0 %v134, 113
    %v1455 = vpop.permute.xlu0 %1454
    %1456 = vrot.lane.b32.xlu0 %v135, 113
    %v1457 = vpop.permute.xlu0 %1456
    %vm1458 = vcmp.lt.s32.totalorder %v143, 113
    %v1459 = vsel %vm1458, %v1455, %v1457
    %v1460 = vsel %vm1458, %v1457, %v1455
    %1461 = vrot.lane.b32.xlu0 %v151, 113
    %v1462 = vpop.permute.xlu0 %1461
    %1463 = vrot.lane.b32.xlu0 %v152, 113
    %v1464 = vpop.permute.xlu0 %1463
    %v1465 = vsel %vm1458, %v1462, %v1464
    %v1466 = vsel %vm1458, %v1464, %v1462
    %s1467 = scalar_lea.vmem [#allocation3], 120
    %v1468 = vld [vmem:[%s1467] sm:$0xf]
    %v1471 = vcombine.low %v1459, %v1460
    %v1473 = vunpack.c.l.s4 1983009808
    %v1474 = vunpack.c.0.s8 %v1473
    %v1475 = vlaneseq
    %v1476 = vshrl.u32 %v1475, 7
    %v1477 = vsub.s32 %v1474, %v1476
    %v1478 = vrot.slane %v1471, %v1477
    %v1480 = vmul.f32 %v1468, %v1478
    %v1481 = vadd.f32 %v1453, %v1480
    %s1482 = scalar_lea.vmem [#allocation6], 120
    %v1483 = vld [vmem:[%s1482] sm:$0xf]
    %v1486 = vcombine.low %v1465, %v1466
    %v1488 = vunpack.c.l.s4 1983009808
    %v1489 = vunpack.c.0.s8 %v1488
    %v1490 = vlaneseq
    %v1491 = vshrl.u32 %v1490, 7
    %v1492 = vsub.s32 %v1489, %v1491
    %v1493 = vrot.slane %v1486, %v1492
    %v1495 = vmul.f32 %v1483, %v1493
    %v1496 = vadd.f32 %v1481, %v1495
    %1497 = vrot.lane.b32.xlu0 %v134, 112
    %v1498 = vpop.permute.xlu0 %1497
    %1499 = vrot.lane.b32.xlu0 %v135, 112
    %v1500 = vpop.permute.xlu0 %1499
    %vm1501 = vcmp.lt.s32.totalorder %v143, 112
    %v1502 = vsel %vm1501, %v1498, %v1500
    %v1503 = vsel %vm1501, %v1500, %v1498
    %1504 = vrot.lane.b32.xlu0 %v151, 112
    %v1505 = vpop.permute.xlu0 %1504
    %1506 = vrot.lane.b32.xlu0 %v152, 112
    %v1507 = vpop.permute.xlu0 %1506
    %v1508 = vsel %vm1501, %v1505, %v1507
    %v1509 = vsel %vm1501, %v1507, %v1505
    %s1510 = scalar_lea.vmem [#allocation3], 124
    %v1511 = vld [vmem:[%s1510] sm:$0xf]
    %v1514 = vcombine.low %v1502, %v1503
    %v1516 = vunpack.c.l.s4 1983009808
    %v1517 = vunpack.c.0.s8 %v1516
    %v1518 = vlaneseq
    %v1519 = vshrl.u32 %v1518, 7
    %v1520 = vsub.s32 %v1517, %v1519
    %v1521 = vrot.slane %v1514, %v1520
    %v1523 = vmul.f32 %v1511, %v1521
    %v1524 = vadd.f32 %v1496, %v1523
    %s1525 = scalar_lea.vmem [#allocation6], 124
    %v1526 = vld [vmem:[%s1525] sm:$0xf]
    %v1529 = vcombine.low %v1508, %v1509
    %v1531 = vunpack.c.l.s4 1983009808
    %v1532 = vunpack.c.0.s8 %v1531
    %v1533 = vlaneseq
    %v1534 = vshrl.u32 %v1533, 7
    %v1535 = vsub.s32 %v1532, %v1534
    %v1536 = vrot.slane %v1529, %v1535
    %v1538 = vmul.f32 %v1526, %v1536
    %v1539 = vadd.f32 %v1524, %v1538
    %1540 = vrot.lane.b32.xlu0 %v134, 111
    %v1541 = vpop.permute.xlu0 %1540
    %1542 = vrot.lane.b32.xlu0 %v135, 111
    %v1543 = vpop.permute.xlu0 %1542
    %vm1544 = vcmp.lt.s32.totalorder %v143, 111
    %v1545 = vsel %vm1544, %v1541, %v1543
    %v1546 = vsel %vm1544, %v1543, %v1541
    %1547 = vrot.lane.b32.xlu0 %v151, 111
    %v1548 = vpop.permute.xlu0 %1547
    %1549 = vrot.lane.b32.xlu0 %v152, 111
    %v1550 = vpop.permute.xlu0 %1549
    %v1551 = vsel %vm1544, %v1548, %v1550
    %v1552 = vsel %vm1544, %v1550, %v1548
    %s1553 = scalar_lea.vmem [#allocation3], 128
    %v1554 = vld [vmem:[%s1553] sm:$0xf]
    %v1557 = vcombine.low %v1545, %v1546
    %v1559 = vunpack.c.l.s4 1983009808
    %v1560 = vunpack.c.0.s8 %v1559
    %v1561 = vlaneseq
    %v1562 = vshrl.u32 %v1561, 7
    %v1563 = vsub.s32 %v1560, %v1562
    %v1564 = vrot.slane %v1557, %v1563
    %v1566 = vmul.f32 %v1554, %v1564
    %v1567 = vadd.f32 %v1539, %v1566
    %s1568 = scalar_lea.vmem [#allocation6], 128
    %v1569 = vld [vmem:[%s1568] sm:$0xf]
    %v1572 = vcombine.low %v1551, %v1552
    %v1574 = vunpack.c.l.s4 1983009808
    %v1575 = vunpack.c.0.s8 %v1574
    %v1576 = vlaneseq
    %v1577 = vshrl.u32 %v1576, 7
    %v1578 = vsub.s32 %v1575, %v1577
    %v1579 = vrot.slane %v1572, %v1578
    %v1581 = vmul.f32 %v1569, %v1579
    %v1582 = vadd.f32 %v1567, %v1581
    %1583 = vrot.lane.b32.xlu0 %v134, 110
    %v1584 = vpop.permute.xlu0 %1583
    %1585 = vrot.lane.b32.xlu0 %v135, 110
    %v1586 = vpop.permute.xlu0 %1585
    %vm1587 = vcmp.lt.s32.totalorder %v143, 110
    %v1588 = vsel %vm1587, %v1584, %v1586
    %v1589 = vsel %vm1587, %v1586, %v1584
    %1590 = vrot.lane.b32.xlu0 %v151, 110
    %v1591 = vpop.permute.xlu0 %1590
    %1592 = vrot.lane.b32.xlu0 %v152, 110
    %v1593 = vpop.permute.xlu0 %1592
    %v1594 = vsel %vm1587, %v1591, %v1593
    %v1595 = vsel %vm1587, %v1593, %v1591
    %s1596 = scalar_lea.vmem [#allocation3], 132
    %v1597 = vld [vmem:[%s1596] sm:$0xf]
    %v1600 = vcombine.low %v1588, %v1589
    %v1602 = vunpack.c.l.s4 1983009808
    %v1603 = vunpack.c.0.s8 %v1602
    %v1604 = vlaneseq
    %v1605 = vshrl.u32 %v1604, 7
    %v1606 = vsub.s32 %v1603, %v1605
    %v1607 = vrot.slane %v1600, %v1606
    %v1609 = vmul.f32 %v1597, %v1607
    %v1610 = vadd.f32 %v1582, %v1609
    %s1611 = scalar_lea.vmem [#allocation6], 132
    %v1612 = vld [vmem:[%s1611] sm:$0xf]
    %v1615 = vcombine.low %v1594, %v1595
    %v1617 = vunpack.c.l.s4 1983009808
    %v1618 = vunpack.c.0.s8 %v1617
    %v1619 = vlaneseq
    %v1620 = vshrl.u32 %v1619, 7
    %v1621 = vsub.s32 %v1618, %v1620
    %v1622 = vrot.slane %v1615, %v1621
    %v1624 = vmul.f32 %v1612, %v1622
    %v1625 = vadd.f32 %v1610, %v1624
    %1626 = vrot.lane.b32.xlu0 %v134, 109
    %v1627 = vpop.permute.xlu0 %1626
    %1628 = vrot.lane.b32.xlu0 %v135, 109
    %v1629 = vpop.permute.xlu0 %1628
    %vm1630 = vcmp.lt.s32.totalorder %v143, 109
    %v1631 = vsel %vm1630, %v1627, %v1629
    %v1632 = vsel %vm1630, %v1629, %v1627
    %1633 = vrot.lane.b32.xlu0 %v151, 109
    %v1634 = vpop.permute.xlu0 %1633
    %1635 = vrot.lane.b32.xlu0 %v152, 109
    %v1636 = vpop.permute.xlu0 %1635
    %v1637 = vsel %vm1630, %v1634, %v1636
    %v1638 = vsel %vm1630, %v1636, %v1634
    %s1639 = scalar_lea.vmem [#allocation3], 136
    %v1640 = vld [vmem:[%s1639] sm:$0xf]
    %v1643 = vcombine.low %v1631, %v1632
    %v1645 = vunpack.c.l.s4 1983009808
    %v1646 = vunpack.c.0.s8 %v1645
    %v1647 = vlaneseq
    %v1648 = vshrl.u32 %v1647, 7
    %v1649 = vsub.s32 %v1646, %v1648
    %v1650 = vrot.slane %v1643, %v1649
    %v1652 = vmul.f32 %v1640, %v1650
    %v1653 = vadd.f32 %v1625, %v1652
    %s1654 = scalar_lea.vmem [#allocation6], 136
    %v1655 = vld [vmem:[%s1654] sm:$0xf]
    %v1658 = vcombine.low %v1637, %v1638
    %v1660 = vunpack.c.l.s4 1983009808
    %v1661 = vunpack.c.0.s8 %v1660
    %v1662 = vlaneseq
    %v1663 = vshrl.u32 %v1662, 7
    %v1664 = vsub.s32 %v1661, %v1663
    %v1665 = vrot.slane %v1658, %v1664
    %v1667 = vmul.f32 %v1655, %v1665
    %v1668 = vadd.f32 %v1653, %v1667
    %1669 = vrot.lane.b32.xlu0 %v134, 99
    %v1670 = vpop.permute.xlu0 %1669
    %1671 = vrot.lane.b32.xlu0 %v135, 99
    %v1672 = vpop.permute.xlu0 %1671
    %vm1673 = vcmp.lt.s32.totalorder %v143, 99
    %v1674 = vsel %vm1673, %v1670, %v1672
    %v1675 = vsel %vm1673, %v1672, %v1670
    %1676 = vrot.lane.b32.xlu0 %v151, 99
    %v1677 = vpop.permute.xlu0 %1676
    %1678 = vrot.lane.b32.xlu0 %v152, 99
    %v1679 = vpop.permute.xlu0 %1678
    %v1680 = vsel %vm1673, %v1677, %v1679
    %v1681 = vsel %vm1673, %v1679, %v1677
    %s1682 = scalar_lea.vmem [#allocation3], 140
    %v1683 = vld [vmem:[%s1682] sm:$0xf]
    %v1686 = vcombine.low %v1674, %v1675
    %v1688 = vunpack.c.l.s4 1983009808
    %v1689 = vunpack.c.0.s8 %v1688
    %v1690 = vlaneseq
    %v1691 = vshrl.u32 %v1690, 7
    %v1692 = vsub.s32 %v1689, %v1691
    %v1693 = vrot.slane %v1686, %v1692
    %v1695 = vmul.f32 %v1683, %v1693
    %v1696 = vadd.f32 %v1668, %v1695
    %s1697 = scalar_lea.vmem [#allocation6], 140
    %v1698 = vld [vmem:[%s1697] sm:$0xf]
    %v1701 = vcombine.low %v1680, %v1681
    %v1703 = vunpack.c.l.s4 1983009808
    %v1704 = vunpack.c.0.s8 %v1703
    %v1705 = vlaneseq
    %v1706 = vshrl.u32 %v1705, 7
    %v1707 = vsub.s32 %v1704, %v1706
    %v1708 = vrot.slane %v1701, %v1707
    %v1710 = vmul.f32 %v1698, %v1708
    %v1711 = vadd.f32 %v1696, %v1710
    %1712 = vrot.lane.b32.xlu0 %v134, 98
    %v1713 = vpop.permute.xlu0 %1712
    %1714 = vrot.lane.b32.xlu0 %v135, 98
    %v1715 = vpop.permute.xlu0 %1714
    %vm1716 = vcmp.lt.s32.totalorder %v143, 98
    %v1717 = vsel %vm1716, %v1713, %v1715
    %v1718 = vsel %vm1716, %v1715, %v1713
    %1719 = vrot.lane.b32.xlu0 %v151, 98
    %v1720 = vpop.permute.xlu0 %1719
    %1721 = vrot.lane.b32.xlu0 %v152, 98
    %v1722 = vpop.permute.xlu0 %1721
    %v1723 = vsel %vm1716, %v1720, %v1722
    %v1724 = vsel %vm1716, %v1722, %v1720
    %s1725 = scalar_lea.vmem [#allocation3], 144
    %v1726 = vld [vmem:[%s1725] sm:$0xf]
    %v1729 = vcombine.low %v1717, %v1718
    %v1731 = vunpack.c.l.s4 1983009808
    %v1732 = vunpack.c.0.s8 %v1731
    %v1733 = vlaneseq
    %v1734 = vshrl.u32 %v1733, 7
    %v1735 = vsub.s32 %v1732, %v1734
    %v1736 = vrot.slane %v1729, %v1735
    %v1738 = vmul.f32 %v1726, %v1736
    %v1739 = vadd.f32 %v1711, %v1738
    %s1740 = scalar_lea.vmem [#allocation6], 144
    %v1741 = vld [vmem:[%s1740] sm:$0xf]
    %v1744 = vcombine.low %v1723, %v1724
    %v1746 = vunpack.c.l.s4 1983009808
    %v1747 = vunpack.c.0.s8 %v1746
    %v1748 = vlaneseq
    %v1749 = vshrl.u32 %v1748, 7
    %v1750 = vsub.s32 %v1747, %v1749
    %v1751 = vrot.slane %v1744, %v1750
    %v1753 = vmul.f32 %v1741, %v1751
    %v1754 = vadd.f32 %v1739, %v1753
    %1755 = vrot.lane.b32.xlu0 %v134, 97
    %v1756 = vpop.permute.xlu0 %1755
    %1757 = vrot.lane.b32.xlu0 %v135, 97
    %v1758 = vpop.permute.xlu0 %1757
    %vm1759 = vcmp.lt.s32.totalorder %v143, 97
    %v1760 = vsel %vm1759, %v1756, %v1758
    %v1761 = vsel %vm1759, %v1758, %v1756
    %1762 = vrot.lane.b32.xlu0 %v151, 97
    %v1763 = vpop.permute.xlu0 %1762
    %1764 = vrot.lane.b32.xlu0 %v152, 97
    %v1765 = vpop.permute.xlu0 %1764
    %v1766 = vsel %vm1759, %v1763, %v1765
    %v1767 = vsel %vm1759, %v1765, %v1763
    %s1768 = scalar_lea.vmem [#allocation3], 148
    %v1769 = vld [vmem:[%s1768] sm:$0xf]
    %v1772 = vcombine.low %v1760, %v1761
    %v1774 = vunpack.c.l.s4 1983009808
    %v1775 = vunpack.c.0.s8 %v1774
    %v1776 = vlaneseq
    %v1777 = vshrl.u32 %v1776, 7
    %v1778 = vsub.s32 %v1775, %v1777
    %v1779 = vrot.slane %v1772, %v1778
    %v1781 = vmul.f32 %v1769, %v1779
    %v1782 = vadd.f32 %v1754, %v1781
    %s1783 = scalar_lea.vmem [#allocation6], 148
    %v1784 = vld [vmem:[%s1783] sm:$0xf]
    %v1787 = vcombine.low %v1766, %v1767
    %v1789 = vunpack.c.l.s4 1983009808
    %v1790 = vunpack.c.0.s8 %v1789
    %v1791 = vlaneseq
    %v1792 = vshrl.u32 %v1791, 7
    %v1793 = vsub.s32 %v1790, %v1792
    %v1794 = vrot.slane %v1787, %v1793
    %v1796 = vmul.f32 %v1784, %v1794
    %v1797 = vadd.f32 %v1782, %v1796
    %1798 = vrot.lane.b32.xlu0 %v134, 96
    %v1799 = vpop.permute.xlu0 %1798
    %1800 = vrot.lane.b32.xlu0 %v135, 96
    %v1801 = vpop.permute.xlu0 %1800
    %vm1802 = vcmp.lt.s32.totalorder %v143, 96
    %v1803 = vsel %vm1802, %v1799, %v1801
    %v1804 = vsel %vm1802, %v1801, %v1799
    %1805 = vrot.lane.b32.xlu0 %v151, 96
    %v1806 = vpop.permute.xlu0 %1805
    %1807 = vrot.lane.b32.xlu0 %v152, 96
    %v1808 = vpop.permute.xlu0 %1807
    %v1809 = vsel %vm1802, %v1806, %v1808
    %v1810 = vsel %vm1802, %v1808, %v1806
    %s1811 = scalar_lea.vmem [#allocation3], 152
    %v1812 = vld [vmem:[%s1811] sm:$0xf]
    %v1815 = vcombine.low %v1803, %v1804
    %v1817 = vunpack.c.l.s4 1983009808
    %v1818 = vunpack.c.0.s8 %v1817
    %v1819 = vlaneseq
    %v1820 = vshrl.u32 %v1819, 7
    %v1821 = vsub.s32 %v1818, %v1820
    %v1822 = vrot.slane %v1815, %v1821
    %v1824 = vmul.f32 %v1812, %v1822
    %v1825 = vadd.f32 %v1797, %v1824
    %s1826 = scalar_lea.vmem [#allocation6], 152
    %v1827 = vld [vmem:[%s1826] sm:$0xf]
    %v1830 = vcombine.low %v1809, %v1810
    %v1832 = vunpack.c.l.s4 1983009808
    %v1833 = vunpack.c.0.s8 %v1832
    %v1834 = vlaneseq
    %v1835 = vshrl.u32 %v1834, 7
    %v1836 = vsub.s32 %v1833, %v1835
    %v1837 = vrot.slane %v1830, %v1836
    %v1839 = vmul.f32 %v1827, %v1837
    %v1840 = vadd.f32 %v1825, %v1839
    %1841 = vrot.lane.b32.xlu0 %v134, 95
    %v1842 = vpop.permute.xlu0 %1841
    %1843 = vrot.lane.b32.xlu0 %v135, 95
    %v1844 = vpop.permute.xlu0 %1843
    %vm1845 = vcmp.lt.s32.totalorder %v143, 95
    %v1846 = vsel %vm1845, %v1842, %v1844
    %v1847 = vsel %vm1845, %v1844, %v1842
    %1848 = vrot.lane.b32.xlu0 %v151, 95
    %v1849 = vpop.permute.xlu0 %1848
    %1850 = vrot.lane.b32.xlu0 %v152, 95
    %v1851 = vpop.permute.xlu0 %1850
    %v1852 = vsel %vm1845, %v1849, %v1851
    %v1853 = vsel %vm1845, %v1851, %v1849
    %s1854 = scalar_lea.vmem [#allocation3], 156
    %v1855 = vld [vmem:[%s1854] sm:$0xf]
    %v1858 = vcombine.low %v1846, %v1847
    %v1860 = vunpack.c.l.s4 1983009808
    %v1861 = vunpack.c.0.s8 %v1860
    %v1862 = vlaneseq
    %v1863 = vshrl.u32 %v1862, 7
    %v1864 = vsub.s32 %v1861, %v1863
    %v1865 = vrot.slane %v1858, %v1864
    %v1867 = vmul.f32 %v1855, %v1865
    %v1868 = vadd.f32 %v1840, %v1867
    %s1869 = scalar_lea.vmem [#allocation6], 156
    %v1870 = vld [vmem:[%s1869] sm:$0xf]
    %v1873 = vcombine.low %v1852, %v1853
    %v1875 = vunpack.c.l.s4 1983009808
    %v1876 = vunpack.c.0.s8 %v1875
    %v1877 = vlaneseq
    %v1878 = vshrl.u32 %v1877, 7
    %v1879 = vsub.s32 %v1876, %v1878
    %v1880 = vrot.slane %v1873, %v1879
    %v1882 = vmul.f32 %v1870, %v1880
    %v1883 = vadd.f32 %v1868, %v1882
    %1884 = vrot.lane.b32.xlu0 %v134, 94
    %v1885 = vpop.permute.xlu0 %1884
    %1886 = vrot.lane.b32.xlu0 %v135, 94
    %v1887 = vpop.permute.xlu0 %1886
    %vm1888 = vcmp.lt.s32.totalorder %v143, 94
    %v1889 = vsel %vm1888, %v1885, %v1887
    %v1890 = vsel %vm1888, %v1887, %v1885
    %1891 = vrot.lane.b32.xlu0 %v151, 94
    %v1892 = vpop.permute.xlu0 %1891
    %1893 = vrot.lane.b32.xlu0 %v152, 94
    %v1894 = vpop.permute.xlu0 %1893
    %v1895 = vsel %vm1888, %v1892, %v1894
    %v1896 = vsel %vm1888, %v1894, %v1892
    %s1897 = scalar_lea.vmem [#allocation3], 160
    %v1898 = vld [vmem:[%s1897] sm:$0xf]
    %v1901 = vcombine.low %v1889, %v1890
    %v1903 = vunpack.c.l.s4 1983009808
    %v1904 = vunpack.c.0.s8 %v1903
    %v1905 = vlaneseq
    %v1906 = vshrl.u32 %v1905, 7
    %v1907 = vsub.s32 %v1904, %v1906
    %v1908 = vrot.slane %v1901, %v1907
    %v1910 = vmul.f32 %v1898, %v1908
    %v1911 = vadd.f32 %v1883, %v1910
    %s1912 = scalar_lea.vmem [#allocation6], 160
    %v1913 = vld [vmem:[%s1912] sm:$0xf]
    %v1916 = vcombine.low %v1895, %v1896
    %v1918 = vunpack.c.l.s4 1983009808
    %v1919 = vunpack.c.0.s8 %v1918
    %v1920 = vlaneseq
    %v1921 = vshrl.u32 %v1920, 7
    %v1922 = vsub.s32 %v1919, %v1921
    %v1923 = vrot.slane %v1916, %v1922
    %v1925 = vmul.f32 %v1913, %v1923
    %v1926 = vadd.f32 %v1911, %v1925
    %1927 = vrot.lane.b32.xlu0 %v134, 93
    %v1928 = vpop.permute.xlu0 %1927
    %1929 = vrot.lane.b32.xlu0 %v135, 93
    %v1930 = vpop.permute.xlu0 %1929
    %vm1931 = vcmp.lt.s32.totalorder %v143, 93
    %v1932 = vsel %vm1931, %v1928, %v1930
    %v1933 = vsel %vm1931, %v1930, %v1928
    %1934 = vrot.lane.b32.xlu0 %v151, 93
    %v1935 = vpop.permute.xlu0 %1934
    %1936 = vrot.lane.b32.xlu0 %v152, 93
    %v1937 = vpop.permute.xlu0 %1936
    %v1938 = vsel %vm1931, %v1935, %v1937
    %v1939 = vsel %vm1931, %v1937, %v1935
    %s1940 = scalar_lea.vmem [#allocation3], 164
    %v1941 = vld [vmem:[%s1940] sm:$0xf]
    %v1944 = vcombine.low %v1932, %v1933
    %v1946 = vunpack.c.l.s4 1983009808
    %v1947 = vunpack.c.0.s8 %v1946
    %v1948 = vlaneseq
    %v1949 = vshrl.u32 %v1948, 7
    %v1950 = vsub.s32 %v1947, %v1949
    %v1951 = vrot.slane %v1944, %v1950
    %v1953 = vmul.f32 %v1941, %v1951
    %v1954 = vadd.f32 %v1926, %v1953
    %s1955 = scalar_lea.vmem [#allocation6], 164
    %v1956 = vld [vmem:[%s1955] sm:$0xf]
    %v1959 = vcombine.low %v1938, %v1939
    %v1961 = vunpack.c.l.s4 1983009808
    %v1962 = vunpack.c.0.s8 %v1961
    %v1963 = vlaneseq
    %v1964 = vshrl.u32 %v1963, 7
    %v1965 = vsub.s32 %v1962, %v1964
    %v1966 = vrot.slane %v1959, %v1965
    %v1968 = vmul.f32 %v1956, %v1966
    %v1969 = vadd.f32 %v1954, %v1968
    %1970 = vrot.lane.b32.xlu0 %v134, 83
    %v1971 = vpop.permute.xlu0 %1970
    %1972 = vrot.lane.b32.xlu0 %v135, 83
    %v1973 = vpop.permute.xlu0 %1972
    %vm1974 = vcmp.lt.s32.totalorder %v143, 83
    %v1975 = vsel %vm1974, %v1971, %v1973
    %v1976 = vsel %vm1974, %v1973, %v1971
    %1977 = vrot.lane.b32.xlu0 %v151, 83
    %v1978 = vpop.permute.xlu0 %1977
    %1979 = vrot.lane.b32.xlu0 %v152, 83
    %v1980 = vpop.permute.xlu0 %1979
    %v1981 = vsel %vm1974, %v1978, %v1980
    %v1982 = vsel %vm1974, %v1980, %v1978
    %s1983 = scalar_lea.vmem [#allocation3], 168
    %v1984 = vld [vmem:[%s1983] sm:$0xf]
    %v1987 = vcombine.low %v1975, %v1976
    %v1989 = vunpack.c.l.s4 1983009808
    %v1990 = vunpack.c.0.s8 %v1989
    %v1991 = vlaneseq
    %v1992 = vshrl.u32 %v1991, 7
    %v1993 = vsub.s32 %v1990, %v1992
    %v1994 = vrot.slane %v1987, %v1993
    %v1996 = vmul.f32 %v1984, %v1994
    %v1997 = vadd.f32 %v1969, %v1996
    %s1998 = scalar_lea.vmem [#allocation6], 168
    %v1999 = vld [vmem:[%s1998] sm:$0xf]
    %v2002 = vcombine.low %v1981, %v1982
    %v2004 = vunpack.c.l.s4 1983009808
    %v2005 = vunpack.c.0.s8 %v2004
    %v2006 = vlaneseq
    %v2007 = vshrl.u32 %v2006, 7
    %v2008 = vsub.s32 %v2005, %v2007
    %v2009 = vrot.slane %v2002, %v2008
    %v2011 = vmul.f32 %v1999, %v2009
    %v2012 = vadd.f32 %v1997, %v2011
    %2013 = vrot.lane.b32.xlu0 %v134, 82
    %v2014 = vpop.permute.xlu0 %2013
    %2015 = vrot.lane.b32.xlu0 %v135, 82
    %v2016 = vpop.permute.xlu0 %2015
    %vm2017 = vcmp.lt.s32.totalorder %v143, 82
    %v2018 = vsel %vm2017, %v2014, %v2016
    %v2019 = vsel %vm2017, %v2016, %v2014
    %2020 = vrot.lane.b32.xlu0 %v151, 82
    %v2021 = vpop.permute.xlu0 %2020
    %2022 = vrot.lane.b32.xlu0 %v152, 82
    %v2023 = vpop.permute.xlu0 %2022
    %v2024 = vsel %vm2017, %v2021, %v2023
    %v2025 = vsel %vm2017, %v2023, %v2021
    %s2026 = scalar_lea.vmem [#allocation3], 172
    %v2027 = vld [vmem:[%s2026] sm:$0xf]
    %v2030 = vcombine.low %v2018, %v2019
    %v2032 = vunpack.c.l.s4 1983009808
    %v2033 = vunpack.c.0.s8 %v2032
    %v2034 = vlaneseq
    %v2035 = vshrl.u32 %v2034, 7
    %v2036 = vsub.s32 %v2033, %v2035
    %v2037 = vrot.slane %v2030, %v2036
    %v2039 = vmul.f32 %v2027, %v2037
    %v2040 = vadd.f32 %v2012, %v2039
    %s2041 = scalar_lea.vmem [#allocation6], 172
    %v2042 = vld [vmem:[%s2041] sm:$0xf]
    %v2045 = vcombine.low %v2024, %v2025
    %v2047 = vunpack.c.l.s4 1983009808
    %v2048 = vunpack.c.0.s8 %v2047
    %v2049 = vlaneseq
    %v2050 = vshrl.u32 %v2049, 7
    %v2051 = vsub.s32 %v2048, %v2050
    %v2052 = vrot.slane %v2045, %v2051
    %v2054 = vmul.f32 %v2042, %v2052
    %v2055 = vadd.f32 %v2040, %v2054
    %2056 = vrot.lane.b32.xlu0 %v134, 81
    %v2057 = vpop.permute.xlu0 %2056
    %2058 = vrot.lane.b32.xlu0 %v135, 81
    %v2059 = vpop.permute.xlu0 %2058
    %vm2060 = vcmp.lt.s32.totalorder %v143, 81
    %v2061 = vsel %vm2060, %v2057, %v2059
    %v2062 = vsel %vm2060, %v2059, %v2057
    %2063 = vrot.lane.b32.xlu0 %v151, 81
    %v2064 = vpop.permute.xlu0 %2063
    %2065 = vrot.lane.b32.xlu0 %v152, 81
    %v2066 = vpop.permute.xlu0 %2065
    %v2067 = vsel %vm2060, %v2064, %v2066
    %v2068 = vsel %vm2060, %v2066, %v2064
    %s2069 = scalar_lea.vmem [#allocation3], 176
    %v2070 = vld [vmem:[%s2069] sm:$0xf]
    %v2073 = vcombine.low %v2061, %v2062
    %v2075 = vunpack.c.l.s4 1983009808
    %v2076 = vunpack.c.0.s8 %v2075
    %v2077 = vlaneseq
    %v2078 = vshrl.u32 %v2077, 7
    %v2079 = vsub.s32 %v2076, %v2078
    %v2080 = vrot.slane %v2073, %v2079
    %v2082 = vmul.f32 %v2070, %v2080
    %v2083 = vadd.f32 %v2055, %v2082
    %s2084 = scalar_lea.vmem [#allocation6], 176
    %v2085 = vld [vmem:[%s2084] sm:$0xf]
    %v2088 = vcombine.low %v2067, %v2068
    %v2090 = vunpack.c.l.s4 1983009808
    %v2091 = vunpack.c.0.s8 %v2090
    %v2092 = vlaneseq
    %v2093 = vshrl.u32 %v2092, 7
    %v2094 = vsub.s32 %v2091, %v2093
    %v2095 = vrot.slane %v2088, %v2094
    %v2097 = vmul.f32 %v2085, %v2095
    %v2098 = vadd.f32 %v2083, %v2097
    %2099 = vrot.lane.b32.xlu0 %v134, 80
    %v2100 = vpop.permute.xlu0 %2099
    %2101 = vrot.lane.b32.xlu0 %v135, 80
    %v2102 = vpop.permute.xlu0 %2101
    %vm2103 = vcmp.lt.s32.totalorder %v143, 80
    %v2104 = vsel %vm2103, %v2100, %v2102
    %v2105 = vsel %vm2103, %v2102, %v2100
    %2106 = vrot.lane.b32.xlu0 %v151, 80
    %v2107 = vpop.permute.xlu0 %2106
    %2108 = vrot.lane.b32.xlu0 %v152, 80
    %v2109 = vpop.permute.xlu0 %2108
    %v2110 = vsel %vm2103, %v2107, %v2109
    %v2111 = vsel %vm2103, %v2109, %v2107
    %s2112 = scalar_lea.vmem [#allocation3], 180
    %v2113 = vld [vmem:[%s2112] sm:$0xf]
    %v2116 = vcombine.low %v2104, %v2105
    %v2118 = vunpack.c.l.s4 1983009808
    %v2119 = vunpack.c.0.s8 %v2118
    %v2120 = vlaneseq
    %v2121 = vshrl.u32 %v2120, 7
    %v2122 = vsub.s32 %v2119, %v2121
    %v2123 = vrot.slane %v2116, %v2122
    %v2125 = vmul.f32 %v2113, %v2123
    %v2126 = vadd.f32 %v2098, %v2125
    %s2127 = scalar_lea.vmem [#allocation6], 180
    %v2128 = vld [vmem:[%s2127] sm:$0xf]
    %v2131 = vcombine.low %v2110, %v2111
    %v2133 = vunpack.c.l.s4 1983009808
    %v2134 = vunpack.c.0.s8 %v2133
    %v2135 = vlaneseq
    %v2136 = vshrl.u32 %v2135, 7
    %v2137 = vsub.s32 %v2134, %v2136
    %v2138 = vrot.slane %v2131, %v2137
    %v2140 = vmul.f32 %v2128, %v2138
    %v2141 = vadd.f32 %v2126, %v2140
    %2142 = vrot.lane.b32.xlu0 %v134, 79
    %v2143 = vpop.permute.xlu0 %2142
    %2144 = vrot.lane.b32.xlu0 %v135, 79
    %v2145 = vpop.permute.xlu0 %2144
    %vm2146 = vcmp.lt.s32.totalorder %v143, 79
    %v2147 = vsel %vm2146, %v2143, %v2145
    %v2148 = vsel %vm2146, %v2145, %v2143
    %2149 = vrot.lane.b32.xlu0 %v151, 79
    %v2150 = vpop.permute.xlu0 %2149
    %2151 = vrot.lane.b32.xlu0 %v152, 79
    %v2152 = vpop.permute.xlu0 %2151
    %v2153 = vsel %vm2146, %v2150, %v2152
    %v2154 = vsel %vm2146, %v2152, %v2150
    %s2155 = scalar_lea.vmem [#allocation3], 184
    %v2156 = vld [vmem:[%s2155] sm:$0xf]
    %v2159 = vcombine.low %v2147, %v2148
    %v2161 = vunpack.c.l.s4 1983009808
    %v2162 = vunpack.c.0.s8 %v2161
    %v2163 = vlaneseq
    %v2164 = vshrl.u32 %v2163, 7
    %v2165 = vsub.s32 %v2162, %v2164
    %v2166 = vrot.slane %v2159, %v2165
    %v2168 = vmul.f32 %v2156, %v2166
    %v2169 = vadd.f32 %v2141, %v2168
    %s2170 = scalar_lea.vmem [#allocation6], 184
    %v2171 = vld [vmem:[%s2170] sm:$0xf]
    %v2174 = vcombine.low %v2153, %v2154
    %v2176 = vunpack.c.l.s4 1983009808
    %v2177 = vunpack.c.0.s8 %v2176
    %v2178 = vlaneseq
    %v2179 = vshrl.u32 %v2178, 7
    %v2180 = vsub.s32 %v2177, %v2179
    %v2181 = vrot.slane %v2174, %v2180
    %v2183 = vmul.f32 %v2171, %v2181
    %v2184 = vadd.f32 %v2169, %v2183
    %2185 = vrot.lane.b32.xlu0 %v134, 78
    %v2186 = vpop.permute.xlu0 %2185
    %2187 = vrot.lane.b32.xlu0 %v135, 78
    %v2188 = vpop.permute.xlu0 %2187
    %vm2189 = vcmp.lt.s32.totalorder %v143, 78
    %v2190 = vsel %vm2189, %v2186, %v2188
    %v2191 = vsel %vm2189, %v2188, %v2186
    %2192 = vrot.lane.b32.xlu0 %v151, 78
    %v2193 = vpop.permute.xlu0 %2192
    %2194 = vrot.lane.b32.xlu0 %v152, 78
    %v2195 = vpop.permute.xlu0 %2194
    %v2196 = vsel %vm2189, %v2193, %v2195
    %v2197 = vsel %vm2189, %v2195, %v2193
    %s2198 = scalar_lea.vmem [#allocation3], 188
    %v2199 = vld [vmem:[%s2198] sm:$0xf]
    %v2202 = vcombine.low %v2190, %v2191
    %v2204 = vunpack.c.l.s4 1983009808
    %v2205 = vunpack.c.0.s8 %v2204
    %v2206 = vlaneseq
    %v2207 = vshrl.u32 %v2206, 7
    %v2208 = vsub.s32 %v2205, %v2207
    %v2209 = vrot.slane %v2202, %v2208
    %v2211 = vmul.f32 %v2199, %v2209
    %v2212 = vadd.f32 %v2184, %v2211
    %s2213 = scalar_lea.vmem [#allocation6], 188
    %v2214 = vld [vmem:[%s2213] sm:$0xf]
    %v2217 = vcombine.low %v2196, %v2197
    %v2219 = vunpack.c.l.s4 1983009808
    %v2220 = vunpack.c.0.s8 %v2219
    %v2221 = vlaneseq
    %v2222 = vshrl.u32 %v2221, 7
    %v2223 = vsub.s32 %v2220, %v2222
    %v2224 = vrot.slane %v2217, %v2223
    %v2226 = vmul.f32 %v2214, %v2224
    %v2227 = vadd.f32 %v2212, %v2226
    %2228 = vrot.lane.b32.xlu0 %v134, 77
    %v2229 = vpop.permute.xlu0 %2228
    %2230 = vrot.lane.b32.xlu0 %v135, 77
    %v2231 = vpop.permute.xlu0 %2230
    %vm2232 = vcmp.lt.s32.totalorder %v143, 77
    %v2233 = vsel %vm2232, %v2229, %v2231
    %v2234 = vsel %vm2232, %v2231, %v2229
    %2235 = vrot.lane.b32.xlu0 %v151, 77
    %v2236 = vpop.permute.xlu0 %2235
    %2237 = vrot.lane.b32.xlu0 %v152, 77
    %v2238 = vpop.permute.xlu0 %2237
    %v2239 = vsel %vm2232, %v2236, %v2238
    %v2240 = vsel %vm2232, %v2238, %v2236
    %s2241 = scalar_lea.vmem [#allocation3], 192
    %v2242 = vld [vmem:[%s2241] sm:$0xf]
    %v2245 = vcombine.low %v2233, %v2234
    %v2247 = vunpack.c.l.s4 1983009808
    %v2248 = vunpack.c.0.s8 %v2247
    %v2249 = vlaneseq
    %v2250 = vshrl.u32 %v2249, 7
    %v2251 = vsub.s32 %v2248, %v2250
    %v2252 = vrot.slane %v2245, %v2251
    %v2254 = vmul.f32 %v2242, %v2252
    %v2255 = vadd.f32 %v2227, %v2254
    %s2256 = scalar_lea.vmem [#allocation6], 192
    %v2257 = vld [vmem:[%s2256] sm:$0xf]
    %v2260 = vcombine.low %v2239, %v2240
    %v2262 = vunpack.c.l.s4 1983009808
    %v2263 = vunpack.c.0.s8 %v2262
    %v2264 = vlaneseq
    %v2265 = vshrl.u32 %v2264, 7
    %v2266 = vsub.s32 %v2263, %v2265
    %v2267 = vrot.slane %v2260, %v2266
    %v2269 = vmul.f32 %v2257, %v2267
    %v2270 = vadd.f32 %v2255, %v2269
    %s2271 = sld [smem:[#allocation2]]
    %v2272 = vstv %s2271
    %v2273 = vadd.f32 %v2270, %v2272
    %v2274 = vxor.u32 %v2273, 2147483648
    %v2275 = vmul.f32 %v2274, 1.442695
    %v2276 = vpow.pop %v2275
    %v2277 = vadd.f32 %v2276, 1.0
    %v2278 = vrcp.pop %v2277
    %v2279 = vmul.f32 1.0, %v2278
    %v2282 = vunpack.c.l.s4 1966171168
    %v2283 = vunpack.c.0.s8 %v2282
    %v2284 = vlaneseq
    %v2285 = vshrl.u32 %v2284, 7
    %v2286 = vsub.s32 %v2283, %v2285
    %v2287 = vrot.slane %v2279, %v2286
    %v2288 = vcombine.high %v2287, %v2287
    %v2289 = vlaneseq
    %v2290 = vshrl.u32 %v2289, 7
    %v2291 = vsub.s32 0, %v2290
    %v2292 = vrot.slane %v2287, %v2291
    %v2293 = vlaneseq
    %v2294 = vshrl.u32 %v2293, 7
    %v2295 = vsub.s32 1, %v2294
    %v2296 = vrot.slane %v2287, %v2295
    %v2297 = vlaneseq
    %v2298 = vshrl.u32 %v2297, 7
    %v2299 = vsub.s32 0, %v2298
    %v2300 = vrot.slane %v2288, %v2299
    %v2301 = vlaneseq
    %v2302 = vshrl.u32 %v2301, 7
    %v2303 = vsub.s32 1, %v2302
    %v2304 = vrot.slane %v2288, %v2303
    %v2305 = vcombine.low %v2292, %v2296
    %v2306 = vcombine.low %v2300, %v2304
    %v2309 = vmul.f32 %v60, %v2305
    %v2310 = vmul.f32 %v61, %v2306
    %2311 = vst [vmem:[#allocation9] sm:$0xff] %v2309
    %2312 = vst [vmem:[#allocation9 + $0x8] sm:$0xff] %v2310
    // Predicated region
    $region30: #{tpu_custom_call.1} parent=1 // pred_check
      _
    $region31: #{tpu_custom_call.1} parent=1 // pred_check_branch
      %2314 = sbr.rel (0) target = $region33
    $region32: #{tpu_custom_call.1} parent=1 // pred_region
      %s2316 = ssub.s32 256, 256
      %2317 = vsyncadd [#allocation5], %s2316
      %s2318 = sshll.u32 [#allocation9], 4
      %s2319 = int_to_ptr.vmem [resolvable:$true] %s2318
      %2324 = dma.vmem_to_hbm [thread:$0]  %s2319, 256, %s4, [#allocation5], 128, 128, 8
    $region33: #{tpu_custom_call.1} parent=1 // pred_fallthru
      _
    // Predicated region
    $region34: #{tpu_custom_call.1} parent=1 // pred_check
      _
    $region35: #{tpu_custom_call.1} parent=1 // pred_check_branch
      %2326 = sbr.rel (0) target = $region37
    $region36: #{tpu_custom_call.1} parent=1 // pred_region
      %2327 = dma.done [#allocation5], 256
    $region37: #{tpu_custom_call.1} parent=1 // pred_fallthru
      _
    %2328 = vsyncpa [#allocation4], 1
    %2329 = vsyncpa [#allocation7], 1
    %2330 = vsyncpa [#allocation5], 1

</llo_original>
